<compile_context>
chip_gen: v5e
topology: v5e:2x2
jax: 0.10.0
libtpu: 0.0.40
codegen_flags: <defaults>
</compile_context>

<pallas_src>
import functools
import math

import jax
import jax.numpy as jnp
from jax import lax
from jax.experimental import pallas as pl
from jax.experimental.pallas import tpu as pltpu

MIN_NORM = 1e-15        # PoincareBall.min_norm
EPS_F32 = 4e-3          # PoincareBall.eps[torch.float32]
CLAMP = 1e-15           # Artanh clamp
LANE = 128


def _round_up(v, m):
    return ((v + m - 1) // m) * m


def _hyp_linear_kernel(x_ref, wt_ref, *rest, c, use_bias):
    if use_bias:
        hb_ref, y2_ref, o_ref = rest
    else:
        (o_ref,) = rest

    sqrt_c = math.sqrt(c)
    inv_sqrt_c = 1.0 / sqrt_c
    maxnorm = (1.0 - EPS_F32) * inv_sqrt_c
    maxnorm_sq = maxnorm * maxnorm

    x = x_ref[...]
    x_f32 = x.astype(jnp.float32)                         # (R, Din)

    # ---- mobius_matvec(W, x, c): mx = x @ W^T on the MXU ----
    if wt_ref.dtype == jnp.float32:
        # Strict path: full-f32 (multi-pass MXU emulation).
        mx = jnp.dot(x_f32, wt_ref[...], preferred_element_type=jnp.float32,
                     precision=lax.Precision.HIGHEST)
    else:
        # Fast path: single-pass bf16 MXU matmul with f32 accumulation.
        mx = jnp.dot(x.astype(wt_ref.dtype), wt_ref[...],
                     preferred_element_type=jnp.float32)
    # TODO(synk): a 3-pass (Precision.HIGH-style) middle ground is not exposed by the
    # Mosaic dot lowering; only bf16 single-pass and full-f32 are offered here.

    sumsq_x = jnp.sum(x_f32 * x_f32, axis=-1, keepdims=True)      # (R, 1)
    inv_x_norm = lax.rsqrt(jnp.maximum(sumsq_x, MIN_NORM * MIN_NORM))
    x_norm = sumsq_x * inv_x_norm                                 # == clamp_min(||x||, ~)

    sumsq_mx = jnp.sum(mx * mx, axis=-1, keepdims=True)           # (R, 1)
    inv_mx_norm = lax.rsqrt(jnp.maximum(sumsq_mx, MIN_NORM * MIN_NORM))
    mx_norm = sumsq_mx * inv_mx_norm

    # artanh(clamp(sqrt_c*||x||)) with a single log (z >= 0, lower clamp is dead)
    z = jnp.minimum(sqrt_c * x_norm, 1.0 - CLAMP)
    artanh_z = 0.5 * jnp.log((1.0 + z) / (1.0 - z))
    t = jnp.tanh(mx_norm * inv_x_norm * artanh_z)                 # (R, 1)
    # mv = s_mv * mx ; rows with mx == 0 map to 0
    s_mv = jnp.where(sumsq_mx > 0.0, t * inv_mx_norm * inv_sqrt_c, 0.0)

    # ---- proj(mv, c): ||mv|| = s_mv * ||mx|| (per-row, no extra tile reduction) ----
    mv_norm = s_mv * mx_norm
    s_proj = jnp.where(mv_norm > maxnorm,
                       maxnorm / jnp.maximum(mv_norm, MIN_NORM), 1.0)
    alpha = s_mv * s_proj                                         # res = alpha * mx
    res_norm = alpha * mx_norm
    x2 = res_norm * res_norm                                      # ||res||^2 for mobius_add

    if use_bias:
        hb = hb_ref[...].astype(jnp.float32)                      # (1, Dout) precomputed
        y2 = y2_ref[0, 0]                                         # scalar ||hb||^2 (SMEM)

        # ---- mobius_add(res, hb, c) with res = alpha * mx (never materialized) ----
        mx_dot_hb = jnp.sum(mx * hb, axis=-1, keepdims=True)      # (R, 1)
        xy = alpha * mx_dot_hb
        denom = jnp.maximum(1.0 + 2.0 * c * xy + (c * c) * x2 * y2, MIN_NORM)
        inv_denom = 1.0 / denom
        A = (1.0 + 2.0 * c * xy + c * y2) * inv_denom * alpha     # coefficient of mx
        B = (1.0 - c * x2) * inv_denom                            # coefficient of hb

        # ---- final proj: ||A*mx + B*hb||^2 expanded from already-computed row scalars ----
        madd_sq = jnp.maximum(A * A * sumsq_mx + 2.0 * A * B * mx_dot_hb + B * B * y2, 0.0)
        s_final = jnp.where(
            madd_sq > maxnorm_sq,
            maxnorm * lax.rsqrt(jnp.maximum(madd_sq, MIN_NORM * MIN_NORM)),
            1.0)
        out = (A * s_final) * mx + (B * s_final) * hb
    else:
        out = alpha * mx

    o_ref[...] = out.astype(o_ref.dtype)


def _hyperbolic_bias(bias, c, d_out):
    """proj(expmap0(proj_tan0(b), c), c) — loop-invariant, hoisted out of the kernel."""
    sqrt_c = math.sqrt(c)
    maxnorm = (1.0 - EPS_F32) / sqrt_c
    b = jnp.asarray(bias, jnp.float32).reshape(1, d_out)
    b_norm = jnp.maximum(jnp.linalg.norm(b, axis=-1, keepdims=True), MIN_NORM)
    hb = jnp.tanh(sqrt_c * b_norm) / (sqrt_c * b_norm) * b        # expmap0
    hb_norm = jnp.maximum(jnp.linalg.norm(hb, axis=-1, keepdims=True), MIN_NORM)
    hb = jnp.where(hb_norm > maxnorm, hb / hb_norm * maxnorm, hb)  # proj
    y2 = jnp.sum(hb * hb, axis=-1, keepdims=True)                 # (1, 1) -> SMEM scalar
    return hb, y2


def _choose_block_rows(n, per_row_bytes, row_budget_bytes):
    """Largest row tile (mult. of 8) fitting the budget; keep >= ~8 grid steps when N allows."""
    cap = max(8, (row_budget_bytes // per_row_bytes) // 8 * 8)
    by_steps = max(8, _round_up(-(-n // 8), 8))       # ceil(n/8) rounded up -> ~8 grid steps
    return max(8, min(cap, 1024, by_steps, _round_up(n, 8)))


def hyp_linear(x, weight, bias=None, c=1.0, *, use_bias=True,
               matmul_dtype=jnp.bfloat16, block_rows=None):
    """HypLinear forward (PoincareBall). x: (N, Din), weight: (Dout, Din), bias: (Dout,)."""
    # TODO(synk): training-mode F.dropout on the weight is stochastic; eval-mode (identity)
    # forward is implemented here.
    n, d_in = x.shape
    d_out, d_in_w = weight.shape
    assert d_in_w == d_in, "weight must be (out_features, in_features)"
    d_out_p = _round_up(d_out, LANE)                  # lane-dense output stores

    w_t = jnp.asarray(weight).astype(matmul_dtype).T  # (Din, Dout), transposed once
    if d_out_p != d_out:
        w_t = jnp.pad(w_t, ((0, 0), (0, d_out_p - d_out)))

    inputs = [x, w_t]
    if use_bias:
        assert bias is not None
        hb, y2 = _hyperbolic_bias(bias, float(c), d_out)
        if d_out_p != d_out:
            hb = jnp.pad(hb, ((0, 0), (0, d_out_p - d_out)))
        inputs += [hb, y2]

    # ---- VMEM accounting (resident weight + pipeline buffers + in-kernel temporaries) ----
    try:
        vmem_phys = int(pltpu.get_tpu_info().vmem_capacity_bytes)
    except Exception:
        vmem_phys = 64 << 20                           # v7x per-core size; safe lower bound
    w_bytes = jnp.dtype(matmul_dtype).itemsize
    resident = 2 * d_in * d_out_p * w_bytes + 2 * 8 * d_out_p * 4   # W^T (worst-case 2 bufs) + hb
    per_row = (2 * d_in + 2 * d_out_p) * 4 + (d_in + 3 * d_out_p) * 4 + d_in * w_bytes
    budget = (vmem_phys * 3) // 4 - resident
    if budget < 8 * per_row:
        # TODO(synk): add a Dout (and K) tiling fallback for weights too large to stay
        # VMEM-resident (relevant for very wide layers on v7x's 64 MiB VMEM).
        raise ValueError("HypLinear weight too large to keep VMEM-resident on this TPU")
    if block_rows is None:
        block_rows = _choose_block_rows(n, per_row, budget)
    grid_rows = pl.cdiv(n, block_rows)
    vmem_limit = int(min(vmem_phys,
                         max(16 << 20, resident + block_rows * per_row + (4 << 20))))

    kernel = functools.partial(_hyp_linear_kernel, c=float(c), use_bias=bool(use_bias))
    cost = pl.CostEstimate(
        flops=int(2 * n * d_in * d_out_p + 16 * n * d_out_p),
        transcendentals=int(4 * n),
        bytes_accessed=int(n * d_in * x.dtype.itemsize + d_in * d_out_p * w_bytes
                           + n * d_out_p * x.dtype.itemsize),
    )

    def resident_spec(shape, mode):
        if mode is None:
            return pl.BlockSpec(shape, lambda i: (0, 0))
        return pl.BlockSpec(shape, lambda i: (0, 0), pipeline_mode=mode)

    def call(weight_mode):
        in_specs = [pl.BlockSpec((block_rows, d_in), lambda i: (i, 0)),
                    resident_spec((d_in, d_out_p), weight_mode)]     # W^T resident
        if use_bias:
            in_specs += [resident_spec((1, d_out_p), weight_mode),   # hb resident
                         pl.BlockSpec(memory_space=pltpu.MemorySpace.SMEM)]  # y2 scalar
        return pl.pallas_call(
            kernel,
            out_shape=jax.ShapeDtypeStruct((n, d_out_p), x.dtype),
            grid_spec=pltpu.PrefetchScalarGridSpec(
                num_scalar_prefetch=0,
                grid=(grid_rows,),
                in_specs=in_specs,
                out_specs=pl.BlockSpec((block_rows, d_out_p), lambda i: (i, 0)),
            ),
            compiler_params=pltpu.CompilerParams(
                dimension_semantics=("parallel",),
                vmem_limit_bytes=vmem_limit),
            cost_estimate=cost,
        )(*inputs)

    try:
        out = call(pl.Buffered(1))     # constant index_map: no second weight buffer
    except Exception:
        out = call(None)               # fallback if single-buffering is unsupported
    return out[:, :d_out] if d_out_p != d_out else out


# ---------------- pure-JAX reference (mirrors the PyTorch PoincareBall math) ----------------
def _proj_ref(x, c):
    norm = jnp.maximum(jnp.linalg.norm(x, axis=-1, keepdims=True), MIN_NORM)
    maxnorm = (1.0 - EPS_F32) / math.sqrt(c)
    return jnp.where(norm > maxnorm, x / norm * maxnorm, x)


def _mobius_add_ref(x, y, c):
    x2 = jnp.sum(x * x, axis=-1, keepdims=True)
    y2 = jnp.sum(y * y, axis=-1, keepdims=True)
    xy = jnp.sum(x * y, axis=-1, keepdims=True)
    num = (1.0 + 2.0 * c * xy + c * y2) * x + (1.0 - c * x2) * y
    denom = 1.0 + 2.0 * c * xy + c * c * x2 * y2
    return num / jnp.maximum(denom, MIN_NORM)


def _hyp_linear_ref(x, weight, bias, c=1.0, use_bias=True):
    sqrt_c = math.sqrt(c)
    x_norm = jnp.maximum(jnp.linalg.norm(x, axis=-1, keepdims=True), MIN_NORM)
    mx = jnp.dot(x, weight.T, precision=lax.Precision.HIGHEST)
    mx_norm = jnp.maximum(jnp.linalg.norm(mx, axis=-1, keepdims=True), MIN_NORM)
    z = jnp.clip(sqrt_c * x_norm, -1.0 + CLAMP, 1.0 - CLAMP)
    res_c = jnp.tanh(mx_norm / x_norm * jnp.arctanh(z)) * mx / (mx_norm * sqrt_c)
    cond = jnp.all(mx == 0.0, axis=-1, keepdims=True)
    mv = jnp.where(cond, jnp.zeros_like(res_c), res_c)
    res = _proj_ref(mv, c)
    if use_bias:
        b = bias.reshape(1, -1)                                    # proj_tan0 = identity
        b_norm = jnp.maximum(jnp.linalg.norm(b, axis=-1, keepdims=True), MIN_NORM)
        hb = jnp.tanh(sqrt_c * b_norm) * b / (sqrt_c * b_norm)     # expmap0
        hb = _proj_ref(hb, c)
        res = _proj_ref(_mobius_add_ref(res, hb, c), c)
    return res


if __name__ == "__main__":
    c = 1.0
    N, D_in, D_out = 130, 32, 64      # ragged N + sub-lane Dout (padded to 128 internally)

    key = jax.random.PRNGKey(0)
    kx, kw, kb = jax.random.split(key, 3)
    # Points near the origin of the Poincare ball (||x|| < 1/sqrt(c)).
    x = 0.1 * jax.random.normal(kx, (N, D_in), dtype=jnp.float32)
    x = x.at[0].set(0.0)              # exercise the all-zero-row branch of mobius_matvec
    # xavier_uniform_(W, gain=sqrt(2)) as in reset_parameters()
    limit = math.sqrt(2.0) * math.sqrt(6.0 / (D_in + D_out))
    w = jax.random.uniform(kw, (D_out, D_in), jnp.float32, minval=-limit, maxval=limit)
    # bias is zero-initialized in the module; use a nonzero one to exercise the bias path
    b = 0.05 * jax.random.normal(kb, (D_out,), dtype=jnp.float32)

    ref = _hyp_linear_ref(x, w, b, c=c, use_bias=True)

    # Fast path (default): single-pass bf16 MXU matmul.
    out = jax.block_until_ready(hyp_linear(x, w, b, c=c, use_bias=True))
    assert out.shape == (N, D_out) and out.dtype == jnp.float32
    assert jnp.allclose(out, ref, atol=1e-2, rtol=1e-2), (
        f"bf16 path mismatch: max abs diff {float(jnp.max(jnp.abs(out - ref)))}")

    # Strict path: full-f32 matmul, tight tolerance against the PoincareBall reference.
    out_f32 = jax.block_until_ready(
        hyp_linear(x, w, b, c=c, use_bias=True, matmul_dtype=jnp.float32))
    assert jnp.allclose(out_f32, ref, atol=2e-5, rtol=2e-5), (
        f"f32 path mismatch: max abs diff {float(jnp.max(jnp.abs(out_f32 - ref)))}")

    # No-bias path.
    ref_nb = _hyp_linear_ref(x, w, b, c=c, use_bias=False)
    out_nb = jax.block_until_ready(
        hyp_linear(x, w, b, c=c, use_bias=False, matmul_dtype=jnp.float32))
    assert jnp.allclose(out_nb, ref_nb, atol=2e-5, rtol=2e-5), (
        f"no-bias mismatch: max abs diff {float(jnp.max(jnp.abs(out_nb - ref_nb)))}")

    print("KERNEL_OK")
</pallas_src>

<mosaic_0001>
module attributes {stable_mosaic.version = 11 : i64} {
  func.func @_hyp_linear_kernel(%arg0: i32, %arg1: memref<24x32xf32, #tpu.memory_space<vmem>>, %arg2: memref<32x128xbf16, #tpu.memory_space<vmem>>, %arg3: memref<1x128xf32, #tpu.memory_space<vmem>>, %arg4: memref<1x1xf32, #tpu.memory_space<smem>>, %arg5: memref<24x128xf32, #tpu.memory_space<vmem>>) attributes {dimension_semantics = [#tpu.dimension_semantics<parallel>], iteration_bounds = array<i64: 6>, scalar_prefetch = 0 : i64, scratch_operands = 0 : i64, tpu.core_type = #tpu.core_type<tc>, window_params = [{transform_indices = @transform_0, window_bounds = array<i64: 24, 32>}, {pipeline_mode = #tpu.pipeline_mode<synchronous>, transform_indices = @transform_1, window_bounds = array<i64: 32, 128>}, {pipeline_mode = #tpu.pipeline_mode<synchronous>, transform_indices = @transform_2, window_bounds = array<i64: 1, 128>}, {transform_indices = @transform_3, window_bounds = array<i64: 1, 1>}, {transform_indices = @transform_4, window_bounds = array<i64: 24, 128>}]} {
    %c0 = arith.constant 0 : index
    %c0_0 = arith.constant 0 : index
    %0 = vector.load %arg1[%c0, %c0_0] : memref<24x32xf32, #tpu.memory_space<vmem>>, vector<24x32xf32>
    %1 = arith.truncf %0 : vector<24x32xf32> to vector<24x32xbf16>
    %c0_1 = arith.constant 0 : index
    %c0_2 = arith.constant 0 : index
    %2 = vector.load %arg2[%c0_1, %c0_2] : memref<32x128xbf16, #tpu.memory_space<vmem>>, vector<32x128xbf16>
    %cst = arith.constant dense<0.000000e+00> : vector<24x128xf32>
    %3 = tpu.matmul %1, %2, %cst {dimension_numbers = #tpu.dot_dimension_numbers<[1], [0], [0], [1], [0, 0, 1, 1], [], []>} : vector<24x32xbf16>, vector<32x128xbf16>, vector<24x128xf32> -> vector<24x128xf32>
    %4 = arith.mulf %0, %0 : vector<24x32xf32>
    %cst_3 = arith.constant dense<0.000000e+00> : vector<24xf32>
    %5 = vector.multi_reduction <add>, %4, %cst_3 [1] : vector<24x32xf32> to vector<24xf32>
    %6 = vector.shape_cast %5 : vector<24xf32> to vector<24x1xf32>
    %cst_4 = arith.constant 1.000000e-30 : f32
    %7 = vector.broadcast %cst_4 : f32 to vector<24x1xf32>
    %8 = arith.maximumf %6, %7 : vector<24x1xf32>
    %9 = math.rsqrt %8 : vector<24x1xf32>
    %10 = arith.mulf %6, %9 : vector<24x1xf32>
    %11 = arith.mulf %3, %3 : vector<24x128xf32>
    %cst_5 = arith.constant dense<0.000000e+00> : vector<24xf32>
    %12 = vector.multi_reduction <add>, %11, %cst_5 [1] : vector<24x128xf32> to vector<24xf32>
    %13 = vector.shape_cast %12 : vector<24xf32> to vector<24x1xf32>
    %cst_6 = arith.constant 1.000000e-30 : f32
    %14 = vector.broadcast %cst_6 : f32 to vector<24x1xf32>
    %15 = arith.maximumf %13, %14 : vector<24x1xf32>
    %16 = math.rsqrt %15 : vector<24x1xf32>
    %17 = arith.mulf %13, %16 : vector<24x1xf32>
    %cst_7 = arith.constant 1.000000e+00 : f32
    %18 = vector.broadcast %cst_7 : f32 to vector<24x1xf32>
    %19 = arith.mulf %18, %10 : vector<24x1xf32>
    %cst_8 = arith.constant 1.000000e+00 : f32
    %20 = vector.broadcast %cst_8 : f32 to vector<24x1xf32>
    %21 = arith.minimumf %19, %20 : vector<24x1xf32>
    %cst_9 = arith.constant 1.000000e+00 : f32
    %22 = vector.broadcast %cst_9 : f32 to vector<24x1xf32>
    %23 = arith.addf %22, %21 : vector<24x1xf32>
    %cst_10 = arith.constant 1.000000e+00 : f32
    %24 = vector.broadcast %cst_10 : f32 to vector<24x1xf32>
    %25 = arith.subf %24, %21 : vector<24x1xf32>
    %26 = arith.divf %23, %25 : vector<24x1xf32>
    %27 = math.log %26 : vector<24x1xf32>
    %cst_11 = arith.constant 5.000000e-01 : f32
    %28 = vector.broadcast %cst_11 : f32 to vector<24x1xf32>
    %29 = arith.mulf %28, %27 : vector<24x1xf32>
    %30 = arith.mulf %17, %9 : vector<24x1xf32>
    %31 = arith.mulf %30, %29 : vector<24x1xf32>
    %32 = math.tanh %31 : vector<24x1xf32>
    %cst_12 = arith.constant 0.000000e+00 : f32
    %33 = vector.broadcast %cst_12 : f32 to vector<24x1xf32>
    %34 = arith.cmpf ogt, %13, %33 : vector<24x1xf32>
    %35 = arith.mulf %32, %16 : vector<24x1xf32>
    %cst_13 = arith.constant 1.000000e+00 : f32
    %36 = vector.broadcast %cst_13 : f32 to vector<24x1xf32>
    %37 = arith.mulf %35, %36 : vector<24x1xf32>
    %cst_14 = arith.constant 0.000000e+00 : f32
    %38 = vector.broadcast %cst_14 : f32 to vector<24x1xf32>
    %39 = arith.select %34, %37, %38 : vector<24x1xi1>, vector<24x1xf32>
    %40 = arith.mulf %39, %17 : vector<24x1xf32>
    %cst_15 = arith.constant 0.995999991 : f32
    %41 = vector.broadcast %cst_15 : f32 to vector<24x1xf32>
    %42 = arith.cmpf ogt, %40, %41 : vector<24x1xf32>
    %cst_16 = arith.constant 1.000000e-15 : f32
    %43 = vector.broadcast %cst_16 : f32 to vector<24x1xf32>
    %44 = arith.maximumf %40, %43 : vector<24x1xf32>
    %cst_17 = arith.constant 0.995999991 : f32
    %45 = vector.broadcast %cst_17 : f32 to vector<24x1xf32>
    %46 = arith.divf %45, %44 : vector<24x1xf32>
    %cst_18 = arith.constant 1.000000e+00 : f32
    %47 = vector.broadcast %cst_18 : f32 to vector<24x1xf32>
    %48 = arith.select %42, %46, %47 : vector<24x1xi1>, vector<24x1xf32>
    %49 = arith.mulf %39, %48 : vector<24x1xf32>
    %50 = arith.mulf %49, %17 : vector<24x1xf32>
    %51 = arith.mulf %50, %50 : vector<24x1xf32>
    %c0_19 = arith.constant 0 : index
    %c0_20 = arith.constant 0 : index
    %52 = vector.load %arg3[%c0_19, %c0_20] : memref<1x128xf32, #tpu.memory_space<vmem>>, vector<1x128xf32>
    %c0_21 = arith.constant 0 : index
    %c0_22 = arith.constant 0 : index
    %53 = memref.load %arg4[%c0_21, %c0_22] : memref<1x1xf32, #tpu.memory_space<smem>>
    %54 = vector.broadcast %52 : vector<1x128xf32> to vector<24x128xf32>
    %55 = arith.mulf %3, %54 : vector<24x128xf32>
    %cst_23 = arith.constant dense<0.000000e+00> : vector<24xf32>
    %56 = vector.multi_reduction <add>, %55, %cst_23 [1] : vector<24x128xf32> to vector<24xf32>
    %57 = vector.shape_cast %56 : vector<24xf32> to vector<24x1xf32>
    %58 = arith.mulf %49, %57 : vector<24x1xf32>
    %cst_24 = arith.constant 2.000000e+00 : f32
    %59 = vector.broadcast %cst_24 : f32 to vector<24x1xf32>
    %60 = arith.mulf %59, %58 : vector<24x1xf32>
    %cst_25 = arith.constant 1.000000e+00 : f32
    %61 = vector.broadcast %cst_25 : f32 to vector<24x1xf32>
    %62 = arith.addf %61, %60 : vector<24x1xf32>
    %cst_26 = arith.constant 1.000000e+00 : f32
    %63 = vector.broadcast %cst_26 : f32 to vector<24x1xf32>
    %64 = arith.mulf %63, %51 : vector<24x1xf32>
    %65 = vector.broadcast %53 : f32 to vector<24x1xf32>
    %66 = arith.mulf %64, %65 : vector<24x1xf32>
    %67 = arith.addf %62, %66 : vector<24x1xf32>
    %cst_27 = arith.constant 1.000000e-15 : f32
    %68 = vector.broadcast %cst_27 : f32 to vector<24x1xf32>
    %69 = arith.maximumf %67, %68 : vector<24x1xf32>
    %cst_28 = arith.constant 1.000000e+00 : f32
    %70 = vector.broadcast %cst_28 : f32 to vector<24x1xf32>
    %71 = arith.divf %70, %69 : vector<24x1xf32>
    %cst_29 = arith.constant 2.000000e+00 : f32
    %72 = vector.broadcast %cst_29 : f32 to vector<24x1xf32>
    %73 = arith.mulf %72, %58 : vector<24x1xf32>
    %cst_30 = arith.constant 1.000000e+00 : f32
    %74 = vector.broadcast %cst_30 : f32 to vector<24x1xf32>
    %75 = arith.addf %74, %73 : vector<24x1xf32>
    %cst_31 = arith.constant 1.000000e+00 : f32
    %76 = arith.mulf %cst_31, %53 : f32
    %77 = vector.broadcast %76 : f32 to vector<24x1xf32>
    %78 = arith.addf %75, %77 : vector<24x1xf32>
    %79 = arith.mulf %78, %71 : vector<24x1xf32>
    %80 = arith.mulf %79, %49 : vector<24x1xf32>
    %cst_32 = arith.constant 1.000000e+00 : f32
    %81 = vector.broadcast %cst_32 : f32 to vector<24x1xf32>
    %82 = arith.mulf %81, %51 : vector<24x1xf32>
    %cst_33 = arith.constant 1.000000e+00 : f32
    %83 = vector.broadcast %cst_33 : f32 to vector<24x1xf32>
    %84 = arith.subf %83, %82 : vector<24x1xf32>
    %85 = arith.mulf %84, %71 : vector<24x1xf32>
    %86 = arith.mulf %80, %80 : vector<24x1xf32>
    %87 = arith.mulf %86, %13 : vector<24x1xf32>
    %cst_34 = arith.constant 2.000000e+00 : f32
    %88 = vector.broadcast %cst_34 : f32 to vector<24x1xf32>
    %89 = arith.mulf %88, %80 : vector<24x1xf32>
    %90 = arith.mulf %89, %85 : vector<24x1xf32>
    %91 = arith.mulf %90, %57 : vector<24x1xf32>
    %92 = arith.addf %87, %91 : vector<24x1xf32>
    %93 = arith.mulf %85, %85 : vector<24x1xf32>
    %94 = vector.broadcast %53 : f32 to vector<24x1xf32>
    %95 = arith.mulf %93, %94 : vector<24x1xf32>
    %96 = arith.addf %92, %95 : vector<24x1xf32>
    %cst_35 = arith.constant 0.000000e+00 : f32
    %97 = vector.broadcast %cst_35 : f32 to vector<24x1xf32>
    %98 = arith.maximumf %96, %97 : vector<24x1xf32>
    %cst_36 = arith.constant 9.920160e-01 : f32
    %99 = vector.broadcast %cst_36 : f32 to vector<24x1xf32>
    %100 = arith.cmpf ogt, %98, %99 : vector<24x1xf32>
    %cst_37 = arith.constant 1.000000e-30 : f32
    %101 = vector.broadcast %cst_37 : f32 to vector<24x1xf32>
    %102 = arith.maximumf %98, %101 : vector<24x1xf32>
    %103 = math.rsqrt %102 : vector<24x1xf32>
    %cst_38 = arith.constant 0.995999991 : f32
    %104 = vector.broadcast %cst_38 : f32 to vector<24x1xf32>
    %105 = arith.mulf %104, %103 : vector<24x1xf32>
    %cst_39 = arith.constant 1.000000e+00 : f32
    %106 = vector.broadcast %cst_39 : f32 to vector<24x1xf32>
    %107 = arith.select %100, %105, %106 : vector<24x1xi1>, vector<24x1xf32>
    %108 = arith.mulf %80, %107 : vector<24x1xf32>
    %109 = vector.broadcast %108 : vector<24x1xf32> to vector<24x128xf32>
    %110 = arith.mulf %109, %3 : vector<24x128xf32>
    %111 = arith.mulf %85, %107 : vector<24x1xf32>
    %112 = vector.broadcast %111 : vector<24x1xf32> to vector<24x128xf32>
    %113 = vector.broadcast %52 : vector<1x128xf32> to vector<24x128xf32>
    %114 = arith.mulf %112, %113 : vector<24x128xf32>
    %115 = arith.addf %110, %114 : vector<24x128xf32>
    %c0_40 = arith.constant 0 : index
    %c0_41 = arith.constant 0 : index
    %116 = vector.load %arg5[%c0_40, %c0_41] : memref<24x128xf32, #tpu.memory_space<vmem>>, vector<24x128xf32>
    tpu.vector_store %arg5[%c0_40, %c0_41], %115 {strides = array<i32>} : memref<24x128xf32, #tpu.memory_space<vmem>>, vector<24x128xf32>,
    return
  }
  func.func @transform_0(%arg0: i32) -> (i32, i32) {
    %c0_i32 = arith.constant 0 : i32
    %c0_i32_0 = arith.constant 0 : i32
    return %arg0, %c0_i32 : i32, i32
  }
  func.func @transform_1(%arg0: i32) -> (i32, i32) {
    %c0_i32 = arith.constant 0 : i32
    %c0_i32_0 = arith.constant 0 : i32
    %c0_i32_1 = arith.constant 0 : i32
    return %c0_i32, %c0_i32_0 : i32, i32
  }
  func.func @transform_2(%arg0: i32) -> (i32, i32) {
    %c0_i32 = arith.constant 0 : i32
    %c0_i32_0 = arith.constant 0 : i32
    %c0_i32_1 = arith.constant 0 : i32
    return %c0_i32, %c0_i32_0 : i32, i32
  }
  func.func @transform_3(%arg0: i32) -> (i32, i32) {
    %c0_i32 = arith.constant 0 : i32
    %c0_i32_0 = arith.constant 0 : i32
    %c0_i32_1 = arith.constant 0 : i32
    return %c0_i32, %c0_i32_0 : i32, i32
  }
  func.func @transform_4(%arg0: i32) -> (i32, i32) {
    %c0_i32 = arith.constant 0 : i32
    %c0_i32_0 = arith.constant 0 : i32
    return %arg0, %c0_i32 : i32, i32
  }
}

module attributes {stable_mosaic.version = 11 : i64} {
  func.func @_hyp_linear_kernel(%arg0: i32, %arg1: memref<24x32xf32, #tpu.memory_space<vmem>>, %arg2: memref<32x128xbf16, #tpu.memory_space<vmem>>, %arg3: memref<1x128xf32, #tpu.memory_space<vmem>>, %arg4: memref<1x1xf32, #tpu.memory_space<smem>>, %arg5: memref<24x128xf32, #tpu.memory_space<vmem>>) attributes {dimension_semantics = [#tpu.dimension_semantics<parallel>], iteration_bounds = array<i64: 6>, scalar_prefetch = 0 : i64, scratch_operands = 0 : i64, tpu.core_type = #tpu.core_type<tc>, window_params = [{transform_indices = @transform_0, window_bounds = array<i64: 24, 32>}, {pipeline_mode = #tpu.pipeline_mode<synchronous>, transform_indices = @transform_1, window_bounds = array<i64: 32, 128>}, {pipeline_mode = #tpu.pipeline_mode<synchronous>, transform_indices = @transform_2, window_bounds = array<i64: 1, 128>}, {transform_indices = @transform_3, window_bounds = array<i64: 1, 1>}, {transform_indices = @transform_4, window_bounds = array<i64: 24, 128>}]} {
    %c0 = arith.constant 0 : index
    %c0_0 = arith.constant 0 : index
    %0 = vector.load %arg1[%c0, %c0_0] : memref<24x32xf32, #tpu.memory_space<vmem>>, vector<24x32xf32>
    %1 = arith.truncf %0 : vector<24x32xf32> to vector<24x32xbf16>
    %c0_1 = arith.constant 0 : index
    %c0_2 = arith.constant 0 : index
    %2 = vector.load %arg2[%c0_1, %c0_2] : memref<32x128xbf16, #tpu.memory_space<vmem>>, vector<32x128xbf16>
    %cst = arith.constant dense<0.000000e+00> : vector<24x128xf32>
    %3 = tpu.matmul %1, %2, %cst {dimension_numbers = #tpu.dot_dimension_numbers<[1], [0], [0], [1], [0, 0, 1, 1], [], []>} : vector<24x32xbf16>, vector<32x128xbf16>, vector<24x128xf32> -> vector<24x128xf32>
    %4 = arith.mulf %0, %0 : vector<24x32xf32>
    %cst_3 = arith.constant dense<0.000000e+00> : vector<24xf32>
    %5 = vector.multi_reduction <add>, %4, %cst_3 [1] : vector<24x32xf32> to vector<24xf32>
    %6 = vector.shape_cast %5 : vector<24xf32> to vector<24x1xf32>
    %cst_4 = arith.constant 1.000000e-30 : f32
    %7 = vector.broadcast %cst_4 : f32 to vector<24x1xf32>
    %8 = arith.maximumf %6, %7 : vector<24x1xf32>
    %9 = math.rsqrt %8 : vector<24x1xf32>
    %10 = arith.mulf %6, %9 : vector<24x1xf32>
    %11 = arith.mulf %3, %3 : vector<24x128xf32>
    %cst_5 = arith.constant dense<0.000000e+00> : vector<24xf32>
    %12 = vector.multi_reduction <add>, %11, %cst_5 [1] : vector<24x128xf32> to vector<24xf32>
    %13 = vector.shape_cast %12 : vector<24xf32> to vector<24x1xf32>
    %cst_6 = arith.constant 1.000000e-30 : f32
    %14 = vector.broadcast %cst_6 : f32 to vector<24x1xf32>
    %15 = arith.maximumf %13, %14 : vector<24x1xf32>
    %16 = math.rsqrt %15 : vector<24x1xf32>
    %17 = arith.mulf %13, %16 : vector<24x1xf32>
    %cst_7 = arith.constant 1.000000e+00 : f32
    %18 = vector.broadcast %cst_7 : f32 to vector<24x1xf32>
    %19 = arith.mulf %18, %10 : vector<24x1xf32>
    %cst_8 = arith.constant 1.000000e+00 : f32
    %20 = vector.broadcast %cst_8 : f32 to vector<24x1xf32>
    %21 = arith.minimumf %19, %20 : vector<24x1xf32>
    %cst_9 = arith.constant 1.000000e+00 : f32
    %22 = vector.broadcast %cst_9 : f32 to vector<24x1xf32>
    %23 = arith.addf %22, %21 : vector<24x1xf32>
    %cst_10 = arith.constant 1.000000e+00 : f32
    %24 = vector.broadcast %cst_10 : f32 to vector<24x1xf32>
    %25 = arith.subf %24, %21 : vector<24x1xf32>
    %26 = arith.divf %23, %25 : vector<24x1xf32>
    %27 = math.log %26 : vector<24x1xf32>
    %cst_11 = arith.constant 5.000000e-01 : f32
    %28 = vector.broadcast %cst_11 : f32 to vector<24x1xf32>
    %29 = arith.mulf %28, %27 : vector<24x1xf32>
    %30 = arith.mulf %17, %9 : vector<24x1xf32>
    %31 = arith.mulf %30, %29 : vector<24x1xf32>
    %32 = math.tanh %31 : vector<24x1xf32>
    %cst_12 = arith.constant 0.000000e+00 : f32
    %33 = vector.broadcast %cst_12 : f32 to vector<24x1xf32>
    %34 = arith.cmpf ogt, %13, %33 : vector<24x1xf32>
    %35 = arith.mulf %32, %16 : vector<24x1xf32>
    %cst_13 = arith.constant 1.000000e+00 : f32
    %36 = vector.broadcast %cst_13 : f32 to vector<24x1xf32>
    %37 = arith.mulf %35, %36 : vector<24x1xf32>
    %cst_14 = arith.constant 0.000000e+00 : f32
    %38 = vector.broadcast %cst_14 : f32 to vector<24x1xf32>
    %39 = arith.select %34, %37, %38 : vector<24x1xi1>, vector<24x1xf32>
    %40 = arith.mulf %39, %17 : vector<24x1xf32>
    %cst_15 = arith.constant 0.995999991 : f32
    %41 = vector.broadcast %cst_15 : f32 to vector<24x1xf32>
    %42 = arith.cmpf ogt, %40, %41 : vector<24x1xf32>
    %cst_16 = arith.constant 1.000000e-15 : f32
    %43 = vector.broadcast %cst_16 : f32 to vector<24x1xf32>
    %44 = arith.maximumf %40, %43 : vector<24x1xf32>
    %cst_17 = arith.constant 0.995999991 : f32
    %45 = vector.broadcast %cst_17 : f32 to vector<24x1xf32>
    %46 = arith.divf %45, %44 : vector<24x1xf32>
    %cst_18 = arith.constant 1.000000e+00 : f32
    %47 = vector.broadcast %cst_18 : f32 to vector<24x1xf32>
    %48 = arith.select %42, %46, %47 : vector<24x1xi1>, vector<24x1xf32>
    %49 = arith.mulf %39, %48 : vector<24x1xf32>
    %50 = arith.mulf %49, %17 : vector<24x1xf32>
    %51 = arith.mulf %50, %50 : vector<24x1xf32>
    %c0_19 = arith.constant 0 : index
    %c0_20 = arith.constant 0 : index
    %52 = vector.load %arg3[%c0_19, %c0_20] : memref<1x128xf32, #tpu.memory_space<vmem>>, vector<1x128xf32>
    %c0_21 = arith.constant 0 : index
    %c0_22 = arith.constant 0 : index
    %53 = memref.load %arg4[%c0_21, %c0_22] : memref<1x1xf32, #tpu.memory_space<smem>>
    %54 = vector.broadcast %52 : vector<1x128xf32> to vector<24x128xf32>
    %55 = arith.mulf %3, %54 : vector<24x128xf32>
    %cst_23 = arith.constant dense<0.000000e+00> : vector<24xf32>
    %56 = vector.multi_reduction <add>, %55, %cst_23 [1] : vector<24x128xf32> to vector<24xf32>
    %57 = vector.shape_cast %56 : vector<24xf32> to vector<24x1xf32>
    %58 = arith.mulf %49, %57 : vector<24x1xf32>
    %cst_24 = arith.constant 2.000000e+00 : f32
    %59 = vector.broadcast %cst_24 : f32 to vector<24x1xf32>
    %60 = arith.mulf %59, %58 : vector<24x1xf32>
    %cst_25 = arith.constant 1.000000e+00 : f32
    %61 = vector.broadcast %cst_25 : f32 to vector<24x1xf32>
    %62 = arith.addf %61, %60 : vector<24x1xf32>
    %cst_26 = arith.constant 1.000000e+00 : f32
    %63 = vector.broadcast %cst_26 : f32 to vector<24x1xf32>
    %64 = arith.mulf %63, %51 : vector<24x1xf32>
    %65 = vector.broadcast %53 : f32 to vector<24x1xf32>
    %66 = arith.mulf %64, %65 : vector<24x1xf32>
    %67 = arith.addf %62, %66 : vector<24x1xf32>
    %cst_27 = arith.constant 1.000000e-15 : f32
    %68 = vector.broadcast %cst_27 : f32 to vector<24x1xf32>
    %69 = arith.maximumf %67, %68 : vector<24x1xf32>
    %cst_28 = arith.constant 1.000000e+00 : f32
    %70 = vector.broadcast %cst_28 : f32 to vector<24x1xf32>
    %71 = arith.divf %70, %69 : vector<24x1xf32>
    %cst_29 = arith.constant 2.000000e+00 : f32
    %72 = vector.broadcast %cst_29 : f32 to vector<24x1xf32>
    %73 = arith.mulf %72, %58 : vector<24x1xf32>
    %cst_30 = arith.constant 1.000000e+00 : f32
    %74 = vector.broadcast %cst_30 : f32 to vector<24x1xf32>
    %75 = arith.addf %74, %73 : vector<24x1xf32>
    %cst_31 = arith.constant 1.000000e+00 : f32
    %76 = arith.mulf %cst_31, %53 : f32
    %77 = vector.broadcast %76 : f32 to vector<24x1xf32>
    %78 = arith.addf %75, %77 : vector<24x1xf32>
    %79 = arith.mulf %78, %71 : vector<24x1xf32>
    %80 = arith.mulf %79, %49 : vector<24x1xf32>
    %cst_32 = arith.constant 1.000000e+00 : f32
    %81 = vector.broadcast %cst_32 : f32 to vector<24x1xf32>
    %82 = arith.mulf %81, %51 : vector<24x1xf32>
    %cst_33 = arith.constant 1.000000e+00 : f32
    %83 = vector.broadcast %cst_33 : f32 to vector<24x1xf32>
    %84 = arith.subf %83, %82 : vector<24x1xf32>
    %85 = arith.mulf %84, %71 : vector<24x1xf32>
    %86 = arith.mulf %80, %80 : vector<24x1xf32>
    %87 = arith.mulf %86, %13 : vector<24x1xf32>
    %cst_34 = arith.constant 2.000000e+00 : f32
    %88 = vector.broadcast %cst_34 : f32 to vector<24x1xf32>
    %89 = arith.mulf %88, %80 : vector<24x1xf32>
    %90 = arith.mulf %89, %85 : vector<24x1xf32>
    %91 = arith.mulf %90, %57 : vector<24x1xf32>
    %92 = arith.addf %87, %91 : vector<24x1xf32>
    %93 = arith.mulf %85, %85 : vector<24x1xf32>
    %94 = vector.broadcast %53 : f32 to vector<24x1xf32>
    %95 = arith.mulf %93, %94 : vector<24x1xf32>
    %96 = arith.addf %92, %95 : vector<24x1xf32>
    %cst_35 = arith.constant 0.000000e+00 : f32
    %97 = vector.broadcast %cst_35 : f32 to vector<24x1xf32>
    %98 = arith.maximumf %96, %97 : vector<24x1xf32>
    %cst_36 = arith.constant 9.920160e-01 : f32
    %99 = vector.broadcast %cst_36 : f32 to vector<24x1xf32>
    %100 = arith.cmpf ogt, %98, %99 : vector<24x1xf32>
    %cst_37 = arith.constant 1.000000e-30 : f32
    %101 = vector.broadcast %cst_37 : f32 to vector<24x1xf32>
    %102 = arith.maximumf %98, %101 : vector<24x1xf32>
    %103 = math.rsqrt %102 : vector<24x1xf32>
    %cst_38 = arith.constant 0.995999991 : f32
    %104 = vector.broadcast %cst_38 : f32 to vector<24x1xf32>
    %105 = arith.mulf %104, %103 : vector<24x1xf32>
    %cst_39 = arith.constant 1.000000e+00 : f32
    %106 = vector.broadcast %cst_39 : f32 to vector<24x1xf32>
    %107 = arith.select %100, %105, %106 : vector<24x1xi1>, vector<24x1xf32>
    %108 = arith.mulf %80, %107 : vector<24x1xf32>
    %109 = vector.broadcast %108 : vector<24x1xf32> to vector<24x128xf32>
    %110 = arith.mulf %109, %3 : vector<24x128xf32>
    %111 = arith.mulf %85, %107 : vector<24x1xf32>
    %112 = vector.broadcast %111 : vector<24x1xf32> to vector<24x128xf32>
    %113 = vector.broadcast %52 : vector<1x128xf32> to vector<24x128xf32>
    %114 = arith.mulf %112, %113 : vector<24x128xf32>
    %115 = arith.addf %110, %114 : vector<24x128xf32>
    %c0_40 = arith.constant 0 : index
    %c0_41 = arith.constant 0 : index
    %116 = vector.load %arg5[%c0_40, %c0_41] : memref<24x128xf32, #tpu.memory_space<vmem>>, vector<24x128xf32>
    tpu.vector_store %arg5[%c0_40, %c0_41], %115 {strides = array<i32>} : memref<24x128xf32, #tpu.memory_space<vmem>>, vector<24x128xf32>,
    return
  }
  func.func @transform_0(%arg0: i32) -> (i32, i32) {
    %c0_i32 = arith.constant 0 : i32
    %c0_i32_0 = arith.constant 0 : i32
    return %arg0, %c0_i32 : i32, i32
  }
  func.func @transform_1(%arg0: i32) -> (i32, i32) {
    %c0_i32 = arith.constant 0 : i32
    %c0_i32_0 = arith.constant 0 : i32
    %c0_i32_1 = arith.constant 0 : i32
    return %c0_i32, %c0_i32_0 : i32, i32
  }
  func.func @transform_2(%arg0: i32) -> (i32, i32) {
    %c0_i32 = arith.constant 0 : i32
    %c0_i32_0 = arith.constant 0 : i32
    %c0_i32_1 = arith.constant 0 : i32
    return %c0_i32, %c0_i32_0 : i32, i32
  }
  func.func @transform_3(%arg0: i32) -> (i32, i32) {
    %c0_i32 = arith.constant 0 : i32
    %c0_i32_0 = arith.constant 0 : i32
    %c0_i32_1 = arith.constant 0 : i32
    return %c0_i32, %c0_i32_0 : i32, i32
  }
  func.func @transform_4(%arg0: i32) -> (i32, i32) {
    %c0_i32 = arith.constant 0 : i32
    %c0_i32_0 = arith.constant 0 : i32
    return %arg0, %c0_i32 : i32, i32
  }
}

</mosaic_0001>

<llo_original>
// kernel: tpu_custom_call.1
$region0: #{tpu_custom_call.1}
  #allocation0 [shape = 'u32[]', space=smem, size = 0x4, offset = 0x4, fixed_abs, tag = 'smem constant byte address 0x4 - core index']
  #allocation1 [shape = 'u32[72,128]{1,0:T(1,128)}', space=vmem, size = 0x9000, scoped, tag = 'internal scratch']
  #allocation2 [shape = 'f32[1,1]{1,0:T(1,128)S(6)}', space=smem, size = 0x200, scoped, tag = 'scoped memory for tpu_custom_call.1']
  %s0 = inlined_call_operand.vmem [shape: f32[130,32], index: 0, kind: input, shape index: {}]
  %s1 = inlined_call_operand.vmem [shape: bf16[32,128], index: 1, kind: input, shape index: {}]
  %s2 = inlined_call_operand.vmem [shape: f32[1,128], index: 2, kind: input, shape index: {}]
  %s3 = inlined_call_operand.<no memory space> [shape: f32[1,1], index: 3, kind: input, shape index: {}]
  %s4 = inlined_call_operand.hbm [shape: f32[130,128], index: 4, kind: output, shape index: {}]
  %s5 = sld [smem:[#allocation0]]
  $region49: #{tpu_custom_call.1} parent=0
    _
  %s7 = ssub.s32 1, %s5
  %s8 = scalar_select 0, %s7, %s5
  %9 = sst [smem:[#allocation2]] %s3
  $region1: #{tpu_custom_call.1} parent=0
    #allocation3 [shape = 'u8[24576]{0}', space=vmem, size = 0x6000, scoped, tag = 'output window, operand 0']
    #allocation4 [shape = 's32[2]{0}', space=sflag, size = 0x8, scoped, tag = 'scoped memory for tpu_custom_call.1']
    %10 = vsyncpa [#allocation4], 0
    %s11 = scalar_lea.sflag [#allocation4], 1
    %12 = vsyncpa %s11, 0
    loop: start=0, step=1, limit=8
    $region2: #{tpu_custom_call.1} parent=1 // loop_pre_header
      _
    $region3: #{tpu_custom_call.1} parent=1 // loop_header
      %s14 = sphi 0, %s18
      %p15 = scmp.ge.s32.totalorder %s14, 8
      %s24 = sphi 0, %s26
      %s27 = sphi 0, %s24
      %s28 = sphi 0, %s27
      %s44 = sphi 0, %s28
      %s48 = sphi 0, %s48
      %s50 = sphi 0, %s48
      %s51 = sphi 0, %s50
      %s65 = sphi 0, %s51
      %s69 = sphi 0, %s69
      %s71 = sphi 0, %s69
      %s72 = sphi 0, %s71
      %s86 = sphi 0, %s72
      %s90 = sphi 0, %s90
      %s92 = sphi 0, %s90
      %s93 = sphi 0, %s92
      %s107 = sphi 0, %s93
      %s113 = sphi 0, %s115
      %s116 = sphi 0, %s113
      %s117 = sphi 0, %s116
      %s133 = sphi 0, %s117
    $region4: #{tpu_custom_call.1} parent=1 // loop_header_branch
      %17 = sbr.rel (%p15) target = $region8
    $region5: #{tpu_custom_call.1} parent=1 // loop_body
      %s19 = ssub.s32 %s14, 1
      %s20 = ssub.s32 %s14, 2
      %s21 = sadd.s32 %s14, 1
      %s22 = ssub.s32 %s14, %s21
      %p23 = scmp.eq.s32.totalorder %s22, 0
      %s25 = sadd.s32 %s24, 1
      %s26 = scalar_select %p23, %s24, %s25
      %p29 = pneg %p23
      %p30 = scmp.eq.s32.totalorder %s14, 5
      %p31 = por %p29, %p30
      %p32 = scmp.ne.s32.totalorder %s24, %s27
      %p33 = scmp.eq.s32.totalorder %s14, 0
      %p34 = por %p32, %p33
      %p35 = scmp.ne.s32.totalorder %s24, %s27
      %p36 = scmp.eq.s32.totalorder %s19, 5
      %p37 = por %p35, %p36
      %p38 = scmp.ne.s32.totalorder %s27, %s28
      %p39 = scmp.eq.s32.totalorder %s19, 0
      %p40 = por %p38, %p39
      %p41 = scmp.ne.s32.totalorder %s27, %s28
      %p42 = scmp.eq.s32.totalorder %s20, 5
      %p43 = por %p41, %p42
      %p45 = scmp.ne.s32.totalorder %s28, %s44
      %p46 = scmp.eq.s32.totalorder %s20, 0
      %p47 = por %p45, %p46
      %s49 = sadd.s32 %s48, 1
      %p52 = scmp.eq.s32.totalorder %s14, 5
      %p53 = scmp.ne.s32.totalorder %s48, %s50
      %p54 = scmp.eq.s32.totalorder %s14, 0
      %p55 = por %p53, %p54
      %p56 = scmp.ne.s32.totalorder %s48, %s50
      %p57 = scmp.eq.s32.totalorder %s19, 5
      %p58 = por %p56, %p57
      %p59 = scmp.ne.s32.totalorder %s50, %s51
      %p60 = scmp.eq.s32.totalorder %s19, 0
      %p61 = por %p59, %p60
      %p62 = scmp.ne.s32.totalorder %s50, %s51
      %p63 = scmp.eq.s32.totalorder %s20, 5
      %p64 = por %p62, %p63
      %p66 = scmp.ne.s32.totalorder %s51, %s65
      %p67 = scmp.eq.s32.totalorder %s20, 0
      %p68 = por %p66, %p67
      %s70 = sadd.s32 %s69, 1
      %p73 = scmp.eq.s32.totalorder %s14, 5
      %p74 = scmp.ne.s32.totalorder %s69, %s71
      %p75 = scmp.eq.s32.totalorder %s14, 0
      %p76 = por %p74, %p75
      %p77 = scmp.ne.s32.totalorder %s69, %s71
      %p78 = scmp.eq.s32.totalorder %s19, 5
      %p79 = por %p77, %p78
      %p80 = scmp.ne.s32.totalorder %s71, %s72
      %p81 = scmp.eq.s32.totalorder %s19, 0
      %p82 = por %p80, %p81
      %p83 = scmp.ne.s32.totalorder %s71, %s72
      %p84 = scmp.eq.s32.totalorder %s20, 5
      %p85 = por %p83, %p84
      %p87 = scmp.ne.s32.totalorder %s72, %s86
      %p88 = scmp.eq.s32.totalorder %s20, 0
      %p89 = por %p87, %p88
      %s91 = sadd.s32 %s90, 1
      %p94 = scmp.eq.s32.totalorder %s14, 5
      %p95 = scmp.ne.s32.totalorder %s90, %s92
      %p96 = scmp.eq.s32.totalorder %s14, 0
      %p97 = por %p95, %p96
      %p98 = scmp.ne.s32.totalorder %s90, %s92
      %p99 = scmp.eq.s32.totalorder %s19, 5
      %p100 = por %p98, %p99
      %p101 = scmp.ne.s32.totalorder %s92, %s93
      %p102 = scmp.eq.s32.totalorder %s19, 0
      %p103 = por %p101, %p102
      %p104 = scmp.ne.s32.totalorder %s92, %s93
      %p105 = scmp.eq.s32.totalorder %s20, 5
      %p106 = por %p104, %p105
      %p108 = scmp.ne.s32.totalorder %s93, %s107
      %p109 = scmp.eq.s32.totalorder %s20, 0
      %p110 = por %p108, %p109
      %s111 = ssub.s32 %s14, %s21
      %p112 = scmp.eq.s32.totalorder %s111, 0
      %s114 = sadd.s32 %s113, 1
      %s115 = scalar_select %p112, %s113, %s114
      %p118 = pneg %p112
      %p119 = scmp.eq.s32.totalorder %s14, 5
      %p120 = por %p118, %p119
      %p121 = scmp.ne.s32.totalorder %s113, %s116
      %p122 = scmp.eq.s32.totalorder %s14, 0
      %p123 = por %p121, %p122
      %p124 = scmp.ne.s32.totalorder %s113, %s116
      %p125 = scmp.eq.s32.totalorder %s19, 5
      %p126 = por %p124, %p125
      %p127 = scmp.ne.s32.totalorder %s116, %s117
      %p128 = scmp.eq.s32.totalorder %s19, 0
      %p129 = por %p127, %p128
      %p130 = scmp.ne.s32.totalorder %s116, %s117
      %p131 = scmp.eq.s32.totalorder %s20, 5
      %p132 = por %p130, %p131
      %p134 = scmp.ne.s32.totalorder %s117, %s133
      %p135 = scmp.eq.s32.totalorder %s20, 0
      %p136 = por %p134, %p135
      %p137 = scmp.le.s32.totalorder 1, %s14
      %p138 = scmp.lt.s32.totalorder %s14, 7
      %p139 = pnand %p137, %p138
      %p140 = pneg %p139
      // Predicated region
      $region9: #{tpu_custom_call.1} parent=5 // pred_check
        _
      $region10: #{tpu_custom_call.1} parent=5 // pred_check_branch
        %142 = sbr.rel (%p139) target = $region12
      $region11: #{tpu_custom_call.1} parent=5 // pred_region
        %s143 = ssub.s32 %s14, 1
        // Predicated region
        $region13: #{tpu_custom_call.1} parent=11 // pred_check
          %p144 = pneg %p61
        $region14: #{tpu_custom_call.1} parent=11 // pred_check_branch
          %146 = sbr.rel (%p144) target = $region16
        $region15: #{tpu_custom_call.1} parent=11 // pred_region
          _
        $region16: #{tpu_custom_call.1} parent=11 // pred_fallthru
          _
        // Predicated region
        $region17: #{tpu_custom_call.1} parent=11 // pred_check
          %p147 = pneg %p82
        $region18: #{tpu_custom_call.1} parent=11 // pred_check_branch
          %149 = sbr.rel (%p147) target = $region20
        $region19: #{tpu_custom_call.1} parent=11 // pred_region
          _
        $region20: #{tpu_custom_call.1} parent=11 // pred_fallthru
          _
        // Predicated region
        $region21: #{tpu_custom_call.1} parent=11 // pred_check
          %p150 = pneg %p103
        $region22: #{tpu_custom_call.1} parent=11 // pred_check_branch
          %152 = sbr.rel (%p150) target = $region24
        $region23: #{tpu_custom_call.1} parent=11 // pred_region
          _
        $region24: #{tpu_custom_call.1} parent=11 // pred_fallthru
          _
      $region12: #{tpu_custom_call.1} parent=5 // pred_fallthru
        _
      %p153 = scmp.lt.s32.totalorder %s14, 6
      // Predicated region
      $region25: #{tpu_custom_call.1} parent=5 // pred_check
        %p154 = pneg %p153
      $region26: #{tpu_custom_call.1} parent=5 // pred_check_branch
        %156 = sbr.rel (%p154) target = $region28
      $region27: #{tpu_custom_call.1} parent=5 // pred_region
        // Predicated region
        $region29: #{tpu_custom_call.1} parent=27 // pred_check
          %p157 = pneg %p34
        $region30: #{tpu_custom_call.1} parent=27 // pred_check_branch
          %159 = sbr.rel (%p157) target = $region32
        $region31: #{tpu_custom_call.1} parent=27 // pred_region
          %s160 = smul.u32 3, %s14
          %s161 = ssub.s32 17, %s160
          %p162 = scmp.lt.s32.totalorder %s161, 3
          %s163 = scalar_select %p162, %s161, 3
          %s164 = smul.u32 8, %s163
          %p165 = scmp.lt.s32.totalorder %s160, 16
          %s166 = scalar_select %p165, %s160, 16
          %s167 = smul.addr %s166, 8
          %s168 = scalar_lea.vmem %s0, %s167
          %s169 = smul.u32 3, %s14
          %s170 = ssub.s32 17, %s169
          %p171 = scmp.lt.s32.totalorder %s170, 3
          %s172 = scalar_select %p171, %s170, 3
          %s173 = smul.u32 8, %s172
        $region32: #{tpu_custom_call.1} parent=27 // pred_fallthru
          _
      $region28: #{tpu_custom_call.1} parent=5 // pred_fallthru
        _
      %p174 = scmp.le.s32.totalorder 1, %s14
      %p175 = scmp.lt.s32.totalorder %s14, 7
      %p176 = pnand %p174, %p175
      %p177 = pneg %p176
      // Predicated region
      $region33: #{tpu_custom_call.1} parent=5 // pred_check
        _
      $region34: #{tpu_custom_call.1} parent=5 // pred_check_branch
        %179 = sbr.rel (%p176) target = $region36
      $region35: #{tpu_custom_call.1} parent=5 // pred_region
        %s180 = ssub.s32 %s14, 1
        %s181 = smul.u32 3, %s19
        %s182 = ssub.s32 17, %s181
        %p183 = scmp.lt.s32.totalorder %s182, 3
        %s184 = scalar_select %p183, %s182, 3
        %s185 = smul.u32 8, %s184
        %p186 = scmp.lt.s32.totalorder %s181, 16
        %s187 = scalar_select %p186, %s181, 16
        %s188 = smul.addr %s187, 8
        %s189 = scalar_lea.vmem %s0, %s188
        %p190 = pneg %p40
        %p191 = pneg %p37
        %p192 = pneg %p61
        %p193 = pneg %p58
        %p194 = pneg %p82
        %p195 = pneg %p79
        %p196 = pneg %p103
        %p197 = pneg %p100
        %p198 = pneg %p129
        %p199 = pneg %p126
        %s200 = sand.u32 %s116, 1
        %s201 = scalar_lea.sflag [#allocation4], %s200
        %s202 = sand.u32 %s116, 1
        %s203 = smul.addr %s202, 24
        %s204 = scalar_lea.vmem [#allocation3], %s203
        %s205 = smul.u32 3, %s19
        %s206 = ssub.s32 17, %s205
        %p207 = scmp.lt.s32.totalorder %s206, 3
        %s208 = scalar_select %p207, %s206, 3
        %s209 = smul.u32 8, %s208
        %p210 = scmp.lt.s32.totalorder %s205, 16
        %s211 = scalar_select %p210, %s205, 16
        %s212 = smul.addr %s211, 8
        %s213 = scalar_lea.vmem %s0, %s212
        %s214 = smul.u32 3, %s19
        %s215 = ssub.s32 17, %s214
        %p216 = scmp.lt.s32.totalorder %s215, 3
        %s217 = scalar_select %p216, %s215, 3
        %s218 = smul.u32 8, %s217
        %s219 = smul.u32 3, %s19
        %s220 = ssub.s32 17, %s219
        %p221 = scmp.lt.s32.totalorder %s220, 3
        %s222 = scalar_select %p221, %s220, 3
        %s223 = smul.u32 8, %s222
        %v225 = vld [vmem:[%s213] sm:$0xff]
        %v226 = vld [vmem:[%s213 + $0x8] sm:$0xff]
        %v227 = vld [vmem:[%s213 + $0x10] sm:$0xff]
        %v228 = vpack.c.bf16 %v226, %v225
        %v229 = vpack.c.bf16 %v227, %v227
        %v230 = vld [vmem:[%s1] sm:$0xf]
        %v231 = vld [vmem:[%s1 + $0x4] sm:$0xf]
        %v232 = vld [vmem:[%s1 + $0x8] sm:$0xf]
        %v233 = vld [vmem:[%s1 + $0xc] sm:$0xf]
        %v238 = vunpack.c.l.b16 %v230
        %v239 = vunpack.c.l.b16 %v231
        %v240 = vunpack.c.l.b16 %v232
        %v241 = vunpack.c.l.b16 %v233
        %v242 = vpack.c.b16 %v239, %v238
        %v243 = vpack.c.b16 %v241, %v240
        %vm246 = vcmask 261120
        %v248 = vsel %vm246, %v228, 0
        %v251 = vsel %vm246, %v229, 0
        %253 = vmatpush.bf16.msra.mxu0 0
        %254 = vmatpush.bf16.msra.mxu0 0
        %255 = vmatpush.bf16.msra.mxu0 0
        %256 = vmatpush.bf16.msra.mxu0 0
        %257 = vmatpush.bf16.msra.mxu0 0
        %258 = vmatpush.bf16.msra.mxu0 0
        %259 = vmatpush.bf16.msra.mxu0 %v243
        %260 = vmatpush.bf16.msra.mxu0 %v242
        %261 = vmatmul.bf16.gmra.mxu0 %v248
        %v262 = vpop.f32.mrf.mxu0
        %v263 = vadd.f32 0.0, %v262
        %v264 = vpop.f32.mrf.mxu0
        %v265 = vadd.f32 0.0, %v264
        %266 = vmatmul.bf16.gmra.mxu0 %v251
        %v267 = vpop.f32.mrf.mxu0
        %v268 = vadd.f32 0.0, %v267
        %v269 = vpop.f32.mrf.mxu0
        %270 = vdwg.mxu0
        %v271 = vmul.f32 %v225, %v225
        %v272 = vmul.f32 %v226, %v226
        %v273 = vmul.f32 %v227, %v227
        %v274 = vsel %vm246, %v271, 0.0
        %275 = vadd.xlane.f32.xlu0 %v274
        %v276 = vpop.xlane.xlu0 %275
        %v277 = vsel %vm246, %v272, 0.0
        %278 = vadd.xlane.f32.xlu0 %v277
        %v279 = vpop.xlane.xlu0 %278
        %v280 = vsel %vm246, %v273, 0.0
        %281 = vadd.xlane.f32.xlu0 %v280
        %v282 = vpop.xlane.xlu0 %281
        %v283 = vmax.f32 %v276, 1e-30
        %v284 = vmax.f32 %v279, 1e-30
        %v285 = vmax.f32 %v282, 1e-30
        %v286 = vrsqrt.pop %v283
        %v287 = vmul.f32 %v286, %v283
        %v288 = vmul.f32 %v287, %v286
        %v289 = vmul.f32 0.5, %v288
        %v290 = vsub.f32 1.5, %v289
        %v291 = vmul.f32 %v286, %v290
        %vm292 = vweird.f32 %v283
        %vm293 = vweird.f32 %v286
        %vm294 = vmor %vm292, %vm293
        %v295 = vsel %vm294, %v286, %v291
        %v296 = vrsqrt.pop %v284
        %v297 = vmul.f32 %v296, %v284
        %v298 = vmul.f32 %v297, %v296
        %v299 = vmul.f32 0.5, %v298
        %v300 = vsub.f32 1.5, %v299
        %v301 = vmul.f32 %v296, %v300
        %vm302 = vweird.f32 %v284
        %vm303 = vweird.f32 %v296
        %vm304 = vmor %vm302, %vm303
        %v305 = vsel %vm304, %v296, %v301
        %v306 = vrsqrt.pop %v285
        %v307 = vmul.f32 %v306, %v285
        %v308 = vmul.f32 %v307, %v306
        %v309 = vmul.f32 0.5, %v308
        %v310 = vsub.f32 1.5, %v309
        %v311 = vmul.f32 %v306, %v310
        %vm312 = vweird.f32 %v285
        %vm313 = vweird.f32 %v306
        %vm314 = vmor %vm312, %vm313
        %v315 = vsel %vm314, %v306, %v311
        %v316 = vmul.f32 %v276, %v295
        %v317 = vmul.f32 %v279, %v305
        %v318 = vmul.f32 %v282, %v315
        %v319 = vmul.f32 %v263, %v263
        %v320 = vmul.f32 %v265, %v265
        %v321 = vmul.f32 %v268, %v268
        %322 = vadd.xlane.f32.xlu0 %v319
        %v323 = vpop.xlane.xlu0 %322
        %324 = vadd.xlane.f32.xlu0 %v320
        %v325 = vpop.xlane.xlu0 %324
        %326 = vadd.xlane.f32.xlu0 %v321
        %v327 = vpop.xlane.xlu0 %326
        %v328 = vmax.f32 %v323, 1e-30
        %v329 = vmax.f32 %v325, 1e-30
        %v330 = vmax.f32 %v327, 1e-30
        %v331 = vrsqrt.pop %v328
        %v332 = vmul.f32 %v331, %v328
        %v333 = vmul.f32 %v332, %v331
        %v334 = vmul.f32 0.5, %v333
        %v335 = vsub.f32 1.5, %v334
        %v336 = vmul.f32 %v331, %v335
        %vm337 = vweird.f32 %v328
        %vm338 = vweird.f32 %v331
        %vm339 = vmor %vm337, %vm338
        %v340 = vsel %vm339, %v331, %v336
        %v341 = vrsqrt.pop %v329
        %v342 = vmul.f32 %v341, %v329
        %v343 = vmul.f32 %v342, %v341
        %v344 = vmul.f32 0.5, %v343
        %v345 = vsub.f32 1.5, %v344
        %v346 = vmul.f32 %v341, %v345
        %vm347 = vweird.f32 %v329
        %vm348 = vweird.f32 %v341
        %vm349 = vmor %vm347, %vm348
        %v350 = vsel %vm349, %v341, %v346
        %v351 = vrsqrt.pop %v330
        %v352 = vmul.f32 %v351, %v330
        %v353 = vmul.f32 %v352, %v351
        %v354 = vmul.f32 0.5, %v353
        %v355 = vsub.f32 1.5, %v354
        %v356 = vmul.f32 %v351, %v355
        %vm357 = vweird.f32 %v330
        %vm358 = vweird.f32 %v351
        %vm359 = vmor %vm357, %vm358
        %v360 = vsel %vm359, %v351, %v356
        %v361 = vmul.f32 %v323, %v340
        %v362 = vmul.f32 %v325, %v350
        %v363 = vmul.f32 %v327, %v360
        %v364 = vmin.f32 %v316, 1.0
        %v365 = vmin.f32 %v317, 1.0
        %v366 = vmin.f32 %v318, 1.0
        %v367 = vadd.f32 %v364, 1.0
        %v368 = vadd.f32 %v365, 1.0
        %v369 = vadd.f32 %v366, 1.0
        %v370 = vsub.f32 1.0, %v364
        %v371 = vsub.f32 1.0, %v365
        %v372 = vsub.f32 1.0, %v366
        %v373 = vrcp.pop %v370
        %v374 = vmul.f32 %v370, %v373
        %v375 = vsub.f32 1.0, %v374
        %v376 = vmul.f32 %v373, %v375
        %v377 = vadd.f32 %v373, %v376
        %vm378 = vweird.f32 %v370
        %vm379 = vweird.f32 %v373
        %vm380 = vmor %vm378, %vm379
        %v381 = vsel %vm380, %v373, %v377
        %v382 = vand.u32 2147483647, %v370
        %vm383 = vcmp.eq.f32.partialorder %v382, 8.507059e+37
        %v384 = vand.u32 %v370, 2147483648
        %v385 = vor.u32 1.1754944e-38, %v384
        %v386 = vsel %vm383, %v385, %v381
        %v387 = vmul.f32 %v367, %v386
        %v388 = vrcp.pop %v371
        %v389 = vmul.f32 %v371, %v388
        %v390 = vsub.f32 1.0, %v389
        %v391 = vmul.f32 %v388, %v390
        %v392 = vadd.f32 %v388, %v391
        %vm393 = vweird.f32 %v371
        %vm394 = vweird.f32 %v388
        %vm395 = vmor %vm393, %vm394
        %v396 = vsel %vm395, %v388, %v392
        %v397 = vand.u32 2147483647, %v371
        %vm398 = vcmp.eq.f32.partialorder %v397, 8.507059e+37
        %v399 = vand.u32 %v371, 2147483648
        %v400 = vor.u32 1.1754944e-38, %v399
        %v401 = vsel %vm398, %v400, %v396
        %v402 = vmul.f32 %v368, %v401
        %v403 = vrcp.pop %v372
        %v404 = vmul.f32 %v372, %v403
        %v405 = vsub.f32 1.0, %v404
        %v406 = vmul.f32 %v403, %v405
        %v407 = vadd.f32 %v403, %v406
        %vm408 = vweird.f32 %v372
        %vm409 = vweird.f32 %v403
        %vm410 = vmor %vm408, %vm409
        %v411 = vsel %vm410, %v403, %v407
        %v412 = vand.u32 2147483647, %v372
        %vm413 = vcmp.eq.f32.partialorder %v412, 8.507059e+37
        %v414 = vand.u32 %v372, 2147483648
        %v415 = vor.u32 1.1754944e-38, %v414
        %v416 = vsel %vm413, %v415, %v411
        %v417 = vmul.f32 %v369, %v416
        %v418 = vlog2.pop %v387
        %v419 = vmul.f32 %v418, 0.6931472
        %v420 = vlog2.pop %v402
        %v421 = vmul.f32 %v420, 0.6931472
        %v422 = vlog2.pop %v417
        %v423 = vmul.f32 %v422, 0.6931472
        %v424 = vmul.f32 %v419, 0.5
        %v425 = vmul.f32 %v421, 0.5
        %v426 = vmul.f32 %v423, 0.5
        %v427 = vmul.f32 %v361, %v295
        %v428 = vmul.f32 %v362, %v305
        %v429 = vmul.f32 %v363, %v315
        %v430 = vmul.f32 %v427, %v424
        %v431 = vmul.f32 %v428, %v425
        %v432 = vmul.f32 %v429, %v426
        %v433 = vtanh.pop %v430
        %v434 = vtanh.pop %v431
        %v435 = vtanh.pop %v432
        %vm436 = vcmp.gt.f32.partialorder %v323, 0.0
        %vm437 = vcmp.gt.f32.partialorder %v325, 0.0
        %vm438 = vcmp.gt.f32.partialorder %v327, 0.0
        %v439 = vmul.f32 %v433, %v340
        %v440 = vmul.f32 %v434, %v350
        %v441 = vmul.f32 %v435, %v360
        %v442 = vsel %vm436, %v439, 0.0
        %v443 = vsel %vm437, %v440, 0.0
        %v444 = vsel %vm438, %v441, 0.0
        %v445 = vmul.f32 %v442, %v361
        %v446 = vmul.f32 %v443, %v362
        %v447 = vmul.f32 %v444, %v363
        %vm448 = vcmp.gt.f32.partialorder %v445, 0.996
        %vm449 = vcmp.gt.f32.partialorder %v446, 0.996
        %vm450 = vcmp.gt.f32.partialorder %v447, 0.996
        %v451 = vmax.f32 %v445, 1e-15
        %v452 = vmax.f32 %v446, 1e-15
        %v453 = vmax.f32 %v447, 1e-15
        %v454 = vrcp.pop %v451
        %v455 = vmul.f32 %v451, %v454
        %v456 = vsub.f32 1.0, %v455
        %v457 = vmul.f32 %v454, %v456
        %v458 = vadd.f32 %v454, %v457
        %vm459 = vweird.f32 %v451
        %vm460 = vweird.f32 %v454
        %vm461 = vmor %vm459, %vm460
        %v462 = vsel %vm461, %v454, %v458
        %v463 = vand.u32 2147483647, %v451
        %vm464 = vcmp.eq.f32.partialorder %v463, 8.507059e+37
        %v465 = vand.u32 %v451, 2147483648
        %v466 = vor.u32 1.1754944e-38, %v465
        %v467 = vsel %vm464, %v466, %v462
        %v468 = vmul.f32 0.996, %v467
        %v469 = vrcp.pop %v452
        %v470 = vmul.f32 %v452, %v469
        %v471 = vsub.f32 1.0, %v470
        %v472 = vmul.f32 %v469, %v471
        %v473 = vadd.f32 %v469, %v472
        %vm474 = vweird.f32 %v452
        %vm475 = vweird.f32 %v469
        %vm476 = vmor %vm474, %vm475
        %v477 = vsel %vm476, %v469, %v473
        %v478 = vand.u32 2147483647, %v452
        %vm479 = vcmp.eq.f32.partialorder %v478, 8.507059e+37
        %v480 = vand.u32 %v452, 2147483648
        %v481 = vor.u32 1.1754944e-38, %v480
        %v482 = vsel %vm479, %v481, %v477
        %v483 = vmul.f32 0.996, %v482
        %v484 = vrcp.pop %v453
        %v485 = vmul.f32 %v453, %v484
        %v486 = vsub.f32 1.0, %v485
        %v487 = vmul.f32 %v484, %v486
        %v488 = vadd.f32 %v484, %v487
        %vm489 = vweird.f32 %v453
        %vm490 = vweird.f32 %v484
        %vm491 = vmor %vm489, %vm490
        %v492 = vsel %vm491, %v484, %v488
        %v493 = vand.u32 2147483647, %v453
        %vm494 = vcmp.eq.f32.partialorder %v493, 8.507059e+37
        %v495 = vand.u32 %v453, 2147483648
        %v496 = vor.u32 1.1754944e-38, %v495
        %v497 = vsel %vm494, %v496, %v492
        %v498 = vmul.f32 0.996, %v497
        %v499 = vsel %vm448, %v468, 1.0
        %v500 = vsel %vm449, %v483, 1.0
        %v501 = vsel %vm450, %v498, 1.0
        %v502 = vmul.f32 %v442, %v499
        %v503 = vmul.f32 %v443, %v500
        %v504 = vmul.f32 %v444, %v501
        %v505 = vmul.f32 %v502, %v361
        %v506 = vmul.f32 %v503, %v362
        %v507 = vmul.f32 %v504, %v363
        %v508 = vmul.f32 %v505, %v505
        %v509 = vmul.f32 %v506, %v506
        %v510 = vmul.f32 %v507, %v507
        %v511 = vld [vmem:[%s2] sm:$0x1]
        %s512 = sld [smem:[#allocation2]]
        %v514 = vperm.slane %v511, 0
        %v516 = vmul.f32 %v263, %v514
        %v517 = vmul.f32 %v265, %v514
        %v518 = vmul.f32 %v268, %v514
        %519 = vadd.xlane.f32.xlu0 %v516
        %v520 = vpop.xlane.xlu0 %519
        %521 = vadd.xlane.f32.xlu0 %v517
        %v522 = vpop.xlane.xlu0 %521
        %523 = vadd.xlane.f32.xlu0 %v518
        %v524 = vpop.xlane.xlu0 %523
        %v525 = vmul.f32 %v502, %v520
        %v526 = vmul.f32 %v503, %v522
        %v527 = vmul.f32 %v504, %v524
        %v528 = vmul.f32 %v525, 2.0
        %v529 = vmul.f32 %v526, 2.0
        %v530 = vmul.f32 %v527, 2.0
        %v531 = vadd.f32 %v528, 1.0
        %v532 = vadd.f32 %v529, 1.0
        %v533 = vadd.f32 %v530, 1.0
        %v534 = vstv %s512
        %v535 = vmul.f32 %v508, %v534
        %v536 = vmul.f32 %v509, %v534
        %v537 = vmul.f32 %v510, %v534
        %v538 = vadd.f32 %v531, %v535
        %v539 = vadd.f32 %v532, %v536
        %v540 = vadd.f32 %v533, %v537
        %v541 = vmax.f32 %v538, 1e-15
        %v542 = vmax.f32 %v539, 1e-15
        %v543 = vmax.f32 %v540, 1e-15
        %v544 = vrcp.pop %v541
        %v545 = vmul.f32 %v541, %v544
        %v546 = vsub.f32 1.0, %v545
        %v547 = vmul.f32 %v544, %v546
        %v548 = vadd.f32 %v544, %v547
        %vm549 = vweird.f32 %v541
        %vm550 = vweird.f32 %v544
        %vm551 = vmor %vm549, %vm550
        %v552 = vsel %vm551, %v544, %v548
        %v553 = vand.u32 2147483647, %v541
        %vm554 = vcmp.eq.f32.partialorder %v553, 8.507059e+37
        %v555 = vand.u32 %v541, 2147483648
        %v556 = vor.u32 1.1754944e-38, %v555
        %v557 = vsel %vm554, %v556, %v552
        %v558 = vmul.f32 1.0, %v557
        %v559 = vrcp.pop %v542
        %v560 = vmul.f32 %v542, %v559
        %v561 = vsub.f32 1.0, %v560
        %v562 = vmul.f32 %v559, %v561
        %v563 = vadd.f32 %v559, %v562
        %vm564 = vweird.f32 %v542
        %vm565 = vweird.f32 %v559
        %vm566 = vmor %vm564, %vm565
        %v567 = vsel %vm566, %v559, %v563
        %v568 = vand.u32 2147483647, %v542
        %vm569 = vcmp.eq.f32.partialorder %v568, 8.507059e+37
        %v570 = vand.u32 %v542, 2147483648
        %v571 = vor.u32 1.1754944e-38, %v570
        %v572 = vsel %vm569, %v571, %v567
        %v573 = vmul.f32 1.0, %v572
        %v574 = vrcp.pop %v543
        %v575 = vmul.f32 %v543, %v574
        %v576 = vsub.f32 1.0, %v575
        %v577 = vmul.f32 %v574, %v576
        %v578 = vadd.f32 %v574, %v577
        %vm579 = vweird.f32 %v543
        %vm580 = vweird.f32 %v574
        %vm581 = vmor %vm579, %vm580
        %v582 = vsel %vm581, %v574, %v578
        %v583 = vand.u32 2147483647, %v543
        %vm584 = vcmp.eq.f32.partialorder %v583, 8.507059e+37
        %v585 = vand.u32 %v543, 2147483648
        %v586 = vor.u32 1.1754944e-38, %v585
        %v587 = vsel %vm584, %v586, %v582
        %v588 = vmul.f32 1.0, %v587
        %v589 = vadd.f32 %v531, %v534
        %v590 = vadd.f32 %v532, %v534
        %v591 = vadd.f32 %v533, %v534
        %v592 = vmul.f32 %v589, %v558
        %v593 = vmul.f32 %v590, %v573
        %v594 = vmul.f32 %v591, %v588
        %v595 = vmul.f32 %v592, %v502
        %v596 = vmul.f32 %v593, %v503
        %v597 = vmul.f32 %v594, %v504
        %v598 = vsub.f32 1.0, %v508
        %v599 = vsub.f32 1.0, %v509
        %v600 = vsub.f32 1.0, %v510
        %v601 = vmul.f32 %v598, %v558
        %v602 = vmul.f32 %v599, %v573
        %v603 = vmul.f32 %v600, %v588
        %v604 = vmul.f32 %v595, %v595
        %v605 = vmul.f32 %v596, %v596
        %v606 = vmul.f32 %v597, %v597
        %v607 = vmul.f32 %v604, %v323
        %v608 = vmul.f32 %v605, %v325
        %v609 = vmul.f32 %v606, %v327
        %v610 = vmul.f32 %v595, 2.0
        %v611 = vmul.f32 %v596, 2.0
        %v612 = vmul.f32 %v597, 2.0
        %v613 = vmul.f32 %v610, %v601
        %v614 = vmul.f32 %v611, %v602
        %v615 = vmul.f32 %v612, %v603
        %v616 = vmul.f32 %v613, %v520
        %v617 = vmul.f32 %v614, %v522
        %v618 = vmul.f32 %v615, %v524
        %v619 = vadd.f32 %v607, %v616
        %v620 = vadd.f32 %v608, %v617
        %v621 = vadd.f32 %v609, %v618
        %v622 = vmul.f32 %v601, %v601
        %v623 = vmul.f32 %v602, %v602
        %v624 = vmul.f32 %v603, %v603
        %v625 = vmul.f32 %v622, %v534
        %v626 = vmul.f32 %v623, %v534
        %v627 = vmul.f32 %v624, %v534
        %v628 = vadd.f32 %v619, %v625
        %v629 = vadd.f32 %v620, %v626
        %v630 = vadd.f32 %v621, %v627
        %v631 = vmax.f32 %v628, 0.0
        %v632 = vmax.f32 %v629, 0.0
        %v633 = vmax.f32 %v630, 0.0
        %vm634 = vcmp.gt.f32.partialorder %v631, 0.992016
        %vm635 = vcmp.gt.f32.partialorder %v632, 0.992016
        %vm636 = vcmp.gt.f32.partialorder %v633, 0.992016
        %v637 = vmax.f32 %v631, 1e-30
        %v638 = vmax.f32 %v632, 1e-30
        %v639 = vmax.f32 %v633, 1e-30
        %v640 = vrsqrt.pop %v637
        %v641 = vmul.f32 %v640, %v637
        %v642 = vmul.f32 %v641, %v640
        %v643 = vmul.f32 0.5, %v642
        %v644 = vsub.f32 1.5, %v643
        %v645 = vmul.f32 %v640, %v644
        %vm646 = vweird.f32 %v637
        %vm647 = vweird.f32 %v640
        %vm648 = vmor %vm646, %vm647
        %v649 = vsel %vm648, %v640, %v645
        %v650 = vrsqrt.pop %v638
        %v651 = vmul.f32 %v650, %v638
        %v652 = vmul.f32 %v651, %v650
        %v653 = vmul.f32 0.5, %v652
        %v654 = vsub.f32 1.5, %v653
        %v655 = vmul.f32 %v650, %v654
        %vm656 = vweird.f32 %v638
        %vm657 = vweird.f32 %v650
        %vm658 = vmor %vm656, %vm657
        %v659 = vsel %vm658, %v650, %v655
        %v660 = vrsqrt.pop %v639
        %v661 = vmul.f32 %v660, %v639
        %v662 = vmul.f32 %v661, %v660
        %v663 = vmul.f32 0.5, %v662
        %v664 = vsub.f32 1.5, %v663
        %v665 = vmul.f32 %v660, %v664
        %vm666 = vweird.f32 %v639
        %vm667 = vweird.f32 %v660
        %vm668 = vmor %vm666, %vm667
        %v669 = vsel %vm668, %v660, %v665
        %v670 = vmul.f32 %v649, 0.996
        %v671 = vmul.f32 %v659, 0.996
        %v672 = vmul.f32 %v669, 0.996
        %v673 = vsel %vm634, %v670, 1.0
        %v674 = vsel %vm635, %v671, 1.0
        %v675 = vsel %vm636, %v672, 1.0
        %v676 = vmul.f32 %v595, %v673
        %v677 = vmul.f32 %v596, %v674
        %v678 = vmul.f32 %v597, %v675
        %v679 = vmul.f32 %v676, %v263
        %v680 = vmul.f32 %v677, %v265
        %v681 = vmul.f32 %v678, %v268
        %v682 = vmul.f32 %v601, %v673
        %v683 = vmul.f32 %v602, %v674
        %v684 = vmul.f32 %v603, %v675
        %v685 = vmul.f32 %v682, %v514
        %v686 = vmul.f32 %v683, %v514
        %v687 = vmul.f32 %v684, %v514
        %v688 = vadd.f32 %v679, %v685
        %v689 = vadd.f32 %v680, %v686
        %v690 = vadd.f32 %v681, %v687
        %691 = vst [vmem:[%s204] sm:$0xff] %v688
        %692 = vst [vmem:[%s204 + $0x8] sm:$0xff] %v689
        %693 = vst [vmem:[%s204 + $0x10] sm:$0xff] %v690
        %s694 = sand.u32 %s116, 1
        %s695 = scalar_lea.sflag [#allocation4], %s694
        %s696 = sand.u32 %s116, 1
        %s697 = smul.addr %s696, 24
        %s698 = scalar_lea.vmem [#allocation3], %s697
        // Predicated region
        $region37: #{tpu_custom_call.1} parent=35 // pred_check
          %p699 = pneg %p126
        $region38: #{tpu_custom_call.1} parent=35 // pred_check_branch
          %701 = sbr.rel (%p699) target = $region40
        $region39: #{tpu_custom_call.1} parent=35 // pred_region
          %s702 = smul.u32 3, %s19
          %s703 = ssub.s32 17, %s702
          %p704 = scmp.lt.s32.totalorder %s703, 3
          %s705 = scalar_select %p704, %s703, 3
          %s706 = smul.u32 8, %s705
          %s707 = ssub.s32 24, %s706
          %s708 = sshll.u32 %s707, 4
          %709 = vsyncadd %s695, %s708
          %p710 = scmp.ne.s32.totalorder 0, %s706
          %s711 = smul.addr %s702, 8
          %s712 = scalar_lea.hbm %s4, %s711
          %s713 = smul.u32 8, %s705
          %s714 = sshll.u32 %s698, 4
          %s715 = int_to_ptr.vmem [resolvable:$true] %s714
          %s716 = sshll.u32 %s712, 4
          %s717 = int_to_ptr.hbm [resolvable:$true] %s716
          %s718 = sshll.u32 %s713, 4
          %722 = dma.vmem_to_hbm [thread:$0]  (%p710), %s715, %s718, %s717, %s695, 128, 128, 8
        $region40: #{tpu_custom_call.1} parent=35 // pred_fallthru
          _
      $region36: #{tpu_custom_call.1} parent=5 // pred_fallthru
        _
      %p723 = scmp.le.s32.totalorder 2, %s14
      // Predicated region
      $region41: #{tpu_custom_call.1} parent=5 // pred_check
        %p724 = pneg %p723
      $region42: #{tpu_custom_call.1} parent=5 // pred_check_branch
        %726 = sbr.rel (%p724) target = $region44
      $region43: #{tpu_custom_call.1} parent=5 // pred_region
        %s727 = ssub.s32 %s14, 2
        // Predicated region
        $region45: #{tpu_custom_call.1} parent=43 // pred_check
          %p728 = pneg %p132
        $region46: #{tpu_custom_call.1} parent=43 // pred_check_branch
          %730 = sbr.rel (%p728) target = $region48
        $region47: #{tpu_custom_call.1} parent=43 // pred_region
          %s731 = sand.u32 %s117, 1
          %s732 = scalar_lea.sflag [#allocation4], %s731
          %s733 = sand.u32 %s117, 1
          %s734 = smul.addr %s733, 24
          %s735 = scalar_lea.vmem [#allocation3], %s734
          %737 = dma.done %s732, 384
        $region48: #{tpu_custom_call.1} parent=43 // pred_fallthru
          _
      $region44: #{tpu_custom_call.1} parent=5 // pred_fallthru
        _
    $region6: #{tpu_custom_call.1} parent=1 // loop_footer
      %s18 = sadd.s32 1, %s14
    $region7: #{tpu_custom_call.1} parent=1 // loop_footer_branch
      %13 = sbr.rel target = $region3
    $region8: #{tpu_custom_call.1} parent=1 // loop_exit
      _
    %738 = vsyncpa [#allocation4], 1
    %s739 = scalar_lea.sflag [#allocation4], 1
    %740 = vsyncpa %s739, 1

// kernel: tpu_custom_call.1
$region0: #{tpu_custom_call.1}
  #allocation0 [shape = 'u32[]', space=smem, size = 0x4, offset = 0x4, fixed_abs, tag = 'smem constant byte address 0x4 - core index']
  #allocation1 [shape = 'u32[72,128]{1,0:T(1,128)}', space=vmem, size = 0x9000, scoped, tag = 'internal scratch']
  #allocation2 [shape = 'f32[1,1]{1,0:T(1,128)S(6)}', space=smem, size = 0x200, scoped, tag = 'scoped memory for tpu_custom_call.1']
  %s0 = inlined_call_operand.vmem [shape: f32[130,32], index: 0, kind: input, shape index: {}]
  %s1 = inlined_call_operand.vmem [shape: bf16[32,128], index: 1, kind: input, shape index: {}]
  %s2 = inlined_call_operand.vmem [shape: f32[1,128], index: 2, kind: input, shape index: {}]
  %s3 = inlined_call_operand.<no memory space> [shape: f32[1,1], index: 3, kind: input, shape index: {}]
  %s4 = inlined_call_operand.hbm [shape: f32[130,128], index: 4, kind: output, shape index: {}]
  %s5 = sld [smem:[#allocation0]]
  $region49: #{tpu_custom_call.1} parent=0
    _
  %s7 = ssub.s32 1, %s5
  %s8 = scalar_select 0, %s7, %s5
  %9 = sst [smem:[#allocation2]] %s3
  $region1: #{tpu_custom_call.1} parent=0
    #allocation3 [shape = 'u8[24576]{0}', space=vmem, size = 0x6000, scoped, tag = 'output window, operand 0']
    #allocation4 [shape = 's32[2]{0}', space=sflag, size = 0x8, scoped, tag = 'scoped memory for tpu_custom_call.1']
    %10 = vsyncpa [#allocation4], 0
    %s11 = scalar_lea.sflag [#allocation4], 1
    %12 = vsyncpa %s11, 0
    loop: start=0, step=1, limit=8
    $region2: #{tpu_custom_call.1} parent=1 // loop_pre_header
      _
    $region3: #{tpu_custom_call.1} parent=1 // loop_header
      %s14 = sphi 0, %s18
      %p15 = scmp.ge.s32.totalorder %s14, 8
      %s24 = sphi 0, %s26
      %s27 = sphi 0, %s24
      %s28 = sphi 0, %s27
      %s44 = sphi 0, %s28
      %s48 = sphi 0, %s48
      %s50 = sphi 0, %s48
      %s51 = sphi 0, %s50
      %s65 = sphi 0, %s51
      %s69 = sphi 0, %s69
      %s71 = sphi 0, %s69
      %s72 = sphi 0, %s71
      %s86 = sphi 0, %s72
      %s90 = sphi 0, %s90
      %s92 = sphi 0, %s90
      %s93 = sphi 0, %s92
      %s107 = sphi 0, %s93
      %s113 = sphi 0, %s115
      %s116 = sphi 0, %s113
      %s117 = sphi 0, %s116
      %s133 = sphi 0, %s117
    $region4: #{tpu_custom_call.1} parent=1 // loop_header_branch
      %17 = sbr.rel (%p15) target = $region8
    $region5: #{tpu_custom_call.1} parent=1 // loop_body
      %s19 = ssub.s32 %s14, 1
      %s20 = ssub.s32 %s14, 2
      %s21 = sadd.s32 %s14, 1
      %s22 = ssub.s32 %s14, %s21
      %p23 = scmp.eq.s32.totalorder %s22, 0
      %s25 = sadd.s32 %s24, 1
      %s26 = scalar_select %p23, %s24, %s25
      %p29 = pneg %p23
      %p30 = scmp.eq.s32.totalorder %s14, 5
      %p31 = por %p29, %p30
      %p32 = scmp.ne.s32.totalorder %s24, %s27
      %p33 = scmp.eq.s32.totalorder %s14, 0
      %p34 = por %p32, %p33
      %p35 = scmp.ne.s32.totalorder %s24, %s27
      %p36 = scmp.eq.s32.totalorder %s19, 5
      %p37 = por %p35, %p36
      %p38 = scmp.ne.s32.totalorder %s27, %s28
      %p39 = scmp.eq.s32.totalorder %s19, 0
      %p40 = por %p38, %p39
      %p41 = scmp.ne.s32.totalorder %s27, %s28
      %p42 = scmp.eq.s32.totalorder %s20, 5
      %p43 = por %p41, %p42
      %p45 = scmp.ne.s32.totalorder %s28, %s44
      %p46 = scmp.eq.s32.totalorder %s20, 0
      %p47 = por %p45, %p46
      %s49 = sadd.s32 %s48, 1
      %p52 = scmp.eq.s32.totalorder %s14, 5
      %p53 = scmp.ne.s32.totalorder %s48, %s50
      %p54 = scmp.eq.s32.totalorder %s14, 0
      %p55 = por %p53, %p54
      %p56 = scmp.ne.s32.totalorder %s48, %s50
      %p57 = scmp.eq.s32.totalorder %s19, 5
      %p58 = por %p56, %p57
      %p59 = scmp.ne.s32.totalorder %s50, %s51
      %p60 = scmp.eq.s32.totalorder %s19, 0
      %p61 = por %p59, %p60
      %p62 = scmp.ne.s32.totalorder %s50, %s51
      %p63 = scmp.eq.s32.totalorder %s20, 5
      %p64 = por %p62, %p63
      %p66 = scmp.ne.s32.totalorder %s51, %s65
      %p67 = scmp.eq.s32.totalorder %s20, 0
      %p68 = por %p66, %p67
      %s70 = sadd.s32 %s69, 1
      %p73 = scmp.eq.s32.totalorder %s14, 5
      %p74 = scmp.ne.s32.totalorder %s69, %s71
      %p75 = scmp.eq.s32.totalorder %s14, 0
      %p76 = por %p74, %p75
      %p77 = scmp.ne.s32.totalorder %s69, %s71
      %p78 = scmp.eq.s32.totalorder %s19, 5
      %p79 = por %p77, %p78
      %p80 = scmp.ne.s32.totalorder %s71, %s72
      %p81 = scmp.eq.s32.totalorder %s19, 0
      %p82 = por %p80, %p81
      %p83 = scmp.ne.s32.totalorder %s71, %s72
      %p84 = scmp.eq.s32.totalorder %s20, 5
      %p85 = por %p83, %p84
      %p87 = scmp.ne.s32.totalorder %s72, %s86
      %p88 = scmp.eq.s32.totalorder %s20, 0
      %p89 = por %p87, %p88
      %s91 = sadd.s32 %s90, 1
      %p94 = scmp.eq.s32.totalorder %s14, 5
      %p95 = scmp.ne.s32.totalorder %s90, %s92
      %p96 = scmp.eq.s32.totalorder %s14, 0
      %p97 = por %p95, %p96
      %p98 = scmp.ne.s32.totalorder %s90, %s92
      %p99 = scmp.eq.s32.totalorder %s19, 5
      %p100 = por %p98, %p99
      %p101 = scmp.ne.s32.totalorder %s92, %s93
      %p102 = scmp.eq.s32.totalorder %s19, 0
      %p103 = por %p101, %p102
      %p104 = scmp.ne.s32.totalorder %s92, %s93
      %p105 = scmp.eq.s32.totalorder %s20, 5
      %p106 = por %p104, %p105
      %p108 = scmp.ne.s32.totalorder %s93, %s107
      %p109 = scmp.eq.s32.totalorder %s20, 0
      %p110 = por %p108, %p109
      %s111 = ssub.s32 %s14, %s21
      %p112 = scmp.eq.s32.totalorder %s111, 0
      %s114 = sadd.s32 %s113, 1
      %s115 = scalar_select %p112, %s113, %s114
      %p118 = pneg %p112
      %p119 = scmp.eq.s32.totalorder %s14, 5
      %p120 = por %p118, %p119
      %p121 = scmp.ne.s32.totalorder %s113, %s116
      %p122 = scmp.eq.s32.totalorder %s14, 0
      %p123 = por %p121, %p122
      %p124 = scmp.ne.s32.totalorder %s113, %s116
      %p125 = scmp.eq.s32.totalorder %s19, 5
      %p126 = por %p124, %p125
      %p127 = scmp.ne.s32.totalorder %s116, %s117
      %p128 = scmp.eq.s32.totalorder %s19, 0
      %p129 = por %p127, %p128
      %p130 = scmp.ne.s32.totalorder %s116, %s117
      %p131 = scmp.eq.s32.totalorder %s20, 5
      %p132 = por %p130, %p131
      %p134 = scmp.ne.s32.totalorder %s117, %s133
      %p135 = scmp.eq.s32.totalorder %s20, 0
      %p136 = por %p134, %p135
      %p137 = scmp.le.s32.totalorder 1, %s14
      %p138 = scmp.lt.s32.totalorder %s14, 7
      %p139 = pnand %p137, %p138
      %p140 = pneg %p139
      // Predicated region
      $region9: #{tpu_custom_call.1} parent=5 // pred_check
        _
      $region10: #{tpu_custom_call.1} parent=5 // pred_check_branch
        %142 = sbr.rel (%p139) target = $region12
      $region11: #{tpu_custom_call.1} parent=5 // pred_region
        %s143 = ssub.s32 %s14, 1
        // Predicated region
        $region13: #{tpu_custom_call.1} parent=11 // pred_check
          %p144 = pneg %p61
        $region14: #{tpu_custom_call.1} parent=11 // pred_check_branch
          %146 = sbr.rel (%p144) target = $region16
        $region15: #{tpu_custom_call.1} parent=11 // pred_region
          _
        $region16: #{tpu_custom_call.1} parent=11 // pred_fallthru
          _
        // Predicated region
        $region17: #{tpu_custom_call.1} parent=11 // pred_check
          %p147 = pneg %p82
        $region18: #{tpu_custom_call.1} parent=11 // pred_check_branch
          %149 = sbr.rel (%p147) target = $region20
        $region19: #{tpu_custom_call.1} parent=11 // pred_region
          _
        $region20: #{tpu_custom_call.1} parent=11 // pred_fallthru
          _
        // Predicated region
        $region21: #{tpu_custom_call.1} parent=11 // pred_check
          %p150 = pneg %p103
        $region22: #{tpu_custom_call.1} parent=11 // pred_check_branch
          %152 = sbr.rel (%p150) target = $region24
        $region23: #{tpu_custom_call.1} parent=11 // pred_region
          _
        $region24: #{tpu_custom_call.1} parent=11 // pred_fallthru
          _
      $region12: #{tpu_custom_call.1} parent=5 // pred_fallthru
        _
      %p153 = scmp.lt.s32.totalorder %s14, 6
      // Predicated region
      $region25: #{tpu_custom_call.1} parent=5 // pred_check
        %p154 = pneg %p153
      $region26: #{tpu_custom_call.1} parent=5 // pred_check_branch
        %156 = sbr.rel (%p154) target = $region28
      $region27: #{tpu_custom_call.1} parent=5 // pred_region
        // Predicated region
        $region29: #{tpu_custom_call.1} parent=27 // pred_check
          %p157 = pneg %p34
        $region30: #{tpu_custom_call.1} parent=27 // pred_check_branch
          %159 = sbr.rel (%p157) target = $region32
        $region31: #{tpu_custom_call.1} parent=27 // pred_region
          %s160 = smul.u32 3, %s14
          %s161 = ssub.s32 17, %s160
          %p162 = scmp.lt.s32.totalorder %s161, 3
          %s163 = scalar_select %p162, %s161, 3
          %s164 = smul.u32 8, %s163
          %p165 = scmp.lt.s32.totalorder %s160, 16
          %s166 = scalar_select %p165, %s160, 16
          %s167 = smul.addr %s166, 8
          %s168 = scalar_lea.vmem %s0, %s167
          %s169 = smul.u32 3, %s14
          %s170 = ssub.s32 17, %s169
          %p171 = scmp.lt.s32.totalorder %s170, 3
          %s172 = scalar_select %p171, %s170, 3
          %s173 = smul.u32 8, %s172
        $region32: #{tpu_custom_call.1} parent=27 // pred_fallthru
          _
      $region28: #{tpu_custom_call.1} parent=5 // pred_fallthru
        _
      %p174 = scmp.le.s32.totalorder 1, %s14
      %p175 = scmp.lt.s32.totalorder %s14, 7
      %p176 = pnand %p174, %p175
      %p177 = pneg %p176
      // Predicated region
      $region33: #{tpu_custom_call.1} parent=5 // pred_check
        _
      $region34: #{tpu_custom_call.1} parent=5 // pred_check_branch
        %179 = sbr.rel (%p176) target = $region36
      $region35: #{tpu_custom_call.1} parent=5 // pred_region
        %s180 = ssub.s32 %s14, 1
        %s181 = smul.u32 3, %s19
        %s182 = ssub.s32 17, %s181
        %p183 = scmp.lt.s32.totalorder %s182, 3
        %s184 = scalar_select %p183, %s182, 3
        %s185 = smul.u32 8, %s184
        %p186 = scmp.lt.s32.totalorder %s181, 16
        %s187 = scalar_select %p186, %s181, 16
        %s188 = smul.addr %s187, 8
        %s189 = scalar_lea.vmem %s0, %s188
        %p190 = pneg %p40
        %p191 = pneg %p37
        %p192 = pneg %p61
        %p193 = pneg %p58
        %p194 = pneg %p82
        %p195 = pneg %p79
        %p196 = pneg %p103
        %p197 = pneg %p100
        %p198 = pneg %p129
        %p199 = pneg %p126
        %s200 = sand.u32 %s116, 1
        %s201 = scalar_lea.sflag [#allocation4], %s200
        %s202 = sand.u32 %s116, 1
        %s203 = smul.addr %s202, 24
        %s204 = scalar_lea.vmem [#allocation3], %s203
        %s205 = smul.u32 3, %s19
        %s206 = ssub.s32 17, %s205
        %p207 = scmp.lt.s32.totalorder %s206, 3
        %s208 = scalar_select %p207, %s206, 3
        %s209 = smul.u32 8, %s208
        %p210 = scmp.lt.s32.totalorder %s205, 16
        %s211 = scalar_select %p210, %s205, 16
        %s212 = smul.addr %s211, 8
        %s213 = scalar_lea.vmem %s0, %s212
        %s214 = smul.u32 3, %s19
        %s215 = ssub.s32 17, %s214
        %p216 = scmp.lt.s32.totalorder %s215, 3
        %s217 = scalar_select %p216, %s215, 3
        %s218 = smul.u32 8, %s217
        %s219 = smul.u32 3, %s19
        %s220 = ssub.s32 17, %s219
        %p221 = scmp.lt.s32.totalorder %s220, 3
        %s222 = scalar_select %p221, %s220, 3
        %s223 = smul.u32 8, %s222
        %v225 = vld [vmem:[%s213] sm:$0xff]
        %v226 = vld [vmem:[%s213 + $0x8] sm:$0xff]
        %v227 = vld [vmem:[%s213 + $0x10] sm:$0xff]
        %v228 = vpack.c.bf16 %v226, %v225
        %v229 = vpack.c.bf16 %v227, %v227
        %v230 = vld [vmem:[%s1] sm:$0xf]
        %v231 = vld [vmem:[%s1 + $0x4] sm:$0xf]
        %v232 = vld [vmem:[%s1 + $0x8] sm:$0xf]
        %v233 = vld [vmem:[%s1 + $0xc] sm:$0xf]
        %v238 = vunpack.c.l.b16 %v230
        %v239 = vunpack.c.l.b16 %v231
        %v240 = vunpack.c.l.b16 %v232
        %v241 = vunpack.c.l.b16 %v233
        %v242 = vpack.c.b16 %v239, %v238
        %v243 = vpack.c.b16 %v241, %v240
        %vm246 = vcmask 261120
        %v248 = vsel %vm246, %v228, 0
        %v251 = vsel %vm246, %v229, 0
        %253 = vmatpush.bf16.msra.mxu0 0
        %254 = vmatpush.bf16.msra.mxu0 0
        %255 = vmatpush.bf16.msra.mxu0 0
        %256 = vmatpush.bf16.msra.mxu0 0
        %257 = vmatpush.bf16.msra.mxu0 0
        %258 = vmatpush.bf16.msra.mxu0 0
        %259 = vmatpush.bf16.msra.mxu0 %v243
        %260 = vmatpush.bf16.msra.mxu0 %v242
        %261 = vmatmul.bf16.gmra.mxu0 %v248
        %v262 = vpop.f32.mrf.mxu0
        %v263 = vadd.f32 0.0, %v262
        %v264 = vpop.f32.mrf.mxu0
        %v265 = vadd.f32 0.0, %v264
        %266 = vmatmul.bf16.gmra.mxu0 %v251
        %v267 = vpop.f32.mrf.mxu0
        %v268 = vadd.f32 0.0, %v267
        %v269 = vpop.f32.mrf.mxu0
        %270 = vdwg.mxu0
        %v271 = vmul.f32 %v225, %v225
        %v272 = vmul.f32 %v226, %v226
        %v273 = vmul.f32 %v227, %v227
        %v274 = vsel %vm246, %v271, 0.0
        %275 = vadd.xlane.f32.xlu0 %v274
        %v276 = vpop.xlane.xlu0 %275
        %v277 = vsel %vm246, %v272, 0.0
        %278 = vadd.xlane.f32.xlu0 %v277
        %v279 = vpop.xlane.xlu0 %278
        %v280 = vsel %vm246, %v273, 0.0
        %281 = vadd.xlane.f32.xlu0 %v280
        %v282 = vpop.xlane.xlu0 %281
        %v283 = vmax.f32 %v276, 1e-30
        %v284 = vmax.f32 %v279, 1e-30
        %v285 = vmax.f32 %v282, 1e-30
        %v286 = vrsqrt.pop %v283
        %v287 = vmul.f32 %v286, %v283
        %v288 = vmul.f32 %v287, %v286
        %v289 = vmul.f32 0.5, %v288
        %v290 = vsub.f32 1.5, %v289
        %v291 = vmul.f32 %v286, %v290
        %vm292 = vweird.f32 %v283
        %vm293 = vweird.f32 %v286
        %vm294 = vmor %vm292, %vm293
        %v295 = vsel %vm294, %v286, %v291
        %v296 = vrsqrt.pop %v284
        %v297 = vmul.f32 %v296, %v284
        %v298 = vmul.f32 %v297, %v296
        %v299 = vmul.f32 0.5, %v298
        %v300 = vsub.f32 1.5, %v299
        %v301 = vmul.f32 %v296, %v300
        %vm302 = vweird.f32 %v284
        %vm303 = vweird.f32 %v296
        %vm304 = vmor %vm302, %vm303
        %v305 = vsel %vm304, %v296, %v301
        %v306 = vrsqrt.pop %v285
        %v307 = vmul.f32 %v306, %v285
        %v308 = vmul.f32 %v307, %v306
        %v309 = vmul.f32 0.5, %v308
        %v310 = vsub.f32 1.5, %v309
        %v311 = vmul.f32 %v306, %v310
        %vm312 = vweird.f32 %v285
        %vm313 = vweird.f32 %v306
        %vm314 = vmor %vm312, %vm313
        %v315 = vsel %vm314, %v306, %v311
        %v316 = vmul.f32 %v276, %v295
        %v317 = vmul.f32 %v279, %v305
        %v318 = vmul.f32 %v282, %v315
        %v319 = vmul.f32 %v263, %v263
        %v320 = vmul.f32 %v265, %v265
        %v321 = vmul.f32 %v268, %v268
        %322 = vadd.xlane.f32.xlu0 %v319
        %v323 = vpop.xlane.xlu0 %322
        %324 = vadd.xlane.f32.xlu0 %v320
        %v325 = vpop.xlane.xlu0 %324
        %326 = vadd.xlane.f32.xlu0 %v321
        %v327 = vpop.xlane.xlu0 %326
        %v328 = vmax.f32 %v323, 1e-30
        %v329 = vmax.f32 %v325, 1e-30
        %v330 = vmax.f32 %v327, 1e-30
        %v331 = vrsqrt.pop %v328
        %v332 = vmul.f32 %v331, %v328
        %v333 = vmul.f32 %v332, %v331
        %v334 = vmul.f32 0.5, %v333
        %v335 = vsub.f32 1.5, %v334
        %v336 = vmul.f32 %v331, %v335
        %vm337 = vweird.f32 %v328
        %vm338 = vweird.f32 %v331
        %vm339 = vmor %vm337, %vm338
        %v340 = vsel %vm339, %v331, %v336
        %v341 = vrsqrt.pop %v329
        %v342 = vmul.f32 %v341, %v329
        %v343 = vmul.f32 %v342, %v341
        %v344 = vmul.f32 0.5, %v343
        %v345 = vsub.f32 1.5, %v344
        %v346 = vmul.f32 %v341, %v345
        %vm347 = vweird.f32 %v329
        %vm348 = vweird.f32 %v341
        %vm349 = vmor %vm347, %vm348
        %v350 = vsel %vm349, %v341, %v346
        %v351 = vrsqrt.pop %v330
        %v352 = vmul.f32 %v351, %v330
        %v353 = vmul.f32 %v352, %v351
        %v354 = vmul.f32 0.5, %v353
        %v355 = vsub.f32 1.5, %v354
        %v356 = vmul.f32 %v351, %v355
        %vm357 = vweird.f32 %v330
        %vm358 = vweird.f32 %v351
        %vm359 = vmor %vm357, %vm358
        %v360 = vsel %vm359, %v351, %v356
        %v361 = vmul.f32 %v323, %v340
        %v362 = vmul.f32 %v325, %v350
        %v363 = vmul.f32 %v327, %v360
        %v364 = vmin.f32 %v316, 1.0
        %v365 = vmin.f32 %v317, 1.0
        %v366 = vmin.f32 %v318, 1.0
        %v367 = vadd.f32 %v364, 1.0
        %v368 = vadd.f32 %v365, 1.0
        %v369 = vadd.f32 %v366, 1.0
        %v370 = vsub.f32 1.0, %v364
        %v371 = vsub.f32 1.0, %v365
        %v372 = vsub.f32 1.0, %v366
        %v373 = vrcp.pop %v370
        %v374 = vmul.f32 %v370, %v373
        %v375 = vsub.f32 1.0, %v374
        %v376 = vmul.f32 %v373, %v375
        %v377 = vadd.f32 %v373, %v376
        %vm378 = vweird.f32 %v370
        %vm379 = vweird.f32 %v373
        %vm380 = vmor %vm378, %vm379
        %v381 = vsel %vm380, %v373, %v377
        %v382 = vand.u32 2147483647, %v370
        %vm383 = vcmp.eq.f32.partialorder %v382, 8.507059e+37
        %v384 = vand.u32 %v370, 2147483648
        %v385 = vor.u32 1.1754944e-38, %v384
        %v386 = vsel %vm383, %v385, %v381
        %v387 = vmul.f32 %v367, %v386
        %v388 = vrcp.pop %v371
        %v389 = vmul.f32 %v371, %v388
        %v390 = vsub.f32 1.0, %v389
        %v391 = vmul.f32 %v388, %v390
        %v392 = vadd.f32 %v388, %v391
        %vm393 = vweird.f32 %v371
        %vm394 = vweird.f32 %v388
        %vm395 = vmor %vm393, %vm394
        %v396 = vsel %vm395, %v388, %v392
        %v397 = vand.u32 2147483647, %v371
        %vm398 = vcmp.eq.f32.partialorder %v397, 8.507059e+37
        %v399 = vand.u32 %v371, 2147483648
        %v400 = vor.u32 1.1754944e-38, %v399
        %v401 = vsel %vm398, %v400, %v396
        %v402 = vmul.f32 %v368, %v401
        %v403 = vrcp.pop %v372
        %v404 = vmul.f32 %v372, %v403
        %v405 = vsub.f32 1.0, %v404
        %v406 = vmul.f32 %v403, %v405
        %v407 = vadd.f32 %v403, %v406
        %vm408 = vweird.f32 %v372
        %vm409 = vweird.f32 %v403
        %vm410 = vmor %vm408, %vm409
        %v411 = vsel %vm410, %v403, %v407
        %v412 = vand.u32 2147483647, %v372
        %vm413 = vcmp.eq.f32.partialorder %v412, 8.507059e+37
        %v414 = vand.u32 %v372, 2147483648
        %v415 = vor.u32 1.1754944e-38, %v414
        %v416 = vsel %vm413, %v415, %v411
        %v417 = vmul.f32 %v369, %v416
        %v418 = vlog2.pop %v387
        %v419 = vmul.f32 %v418, 0.6931472
        %v420 = vlog2.pop %v402
        %v421 = vmul.f32 %v420, 0.6931472
        %v422 = vlog2.pop %v417
        %v423 = vmul.f32 %v422, 0.6931472
        %v424 = vmul.f32 %v419, 0.5
        %v425 = vmul.f32 %v421, 0.5
        %v426 = vmul.f32 %v423, 0.5
        %v427 = vmul.f32 %v361, %v295
        %v428 = vmul.f32 %v362, %v305
        %v429 = vmul.f32 %v363, %v315
        %v430 = vmul.f32 %v427, %v424
        %v431 = vmul.f32 %v428, %v425
        %v432 = vmul.f32 %v429, %v426
        %v433 = vtanh.pop %v430
        %v434 = vtanh.pop %v431
        %v435 = vtanh.pop %v432
        %vm436 = vcmp.gt.f32.partialorder %v323, 0.0
        %vm437 = vcmp.gt.f32.partialorder %v325, 0.0
        %vm438 = vcmp.gt.f32.partialorder %v327, 0.0
        %v439 = vmul.f32 %v433, %v340
        %v440 = vmul.f32 %v434, %v350
        %v441 = vmul.f32 %v435, %v360
        %v442 = vsel %vm436, %v439, 0.0
        %v443 = vsel %vm437, %v440, 0.0
        %v444 = vsel %vm438, %v441, 0.0
        %v445 = vmul.f32 %v442, %v361
        %v446 = vmul.f32 %v443, %v362
        %v447 = vmul.f32 %v444, %v363
        %vm448 = vcmp.gt.f32.partialorder %v445, 0.996
        %vm449 = vcmp.gt.f32.partialorder %v446, 0.996
        %vm450 = vcmp.gt.f32.partialorder %v447, 0.996
        %v451 = vmax.f32 %v445, 1e-15
        %v452 = vmax.f32 %v446, 1e-15
        %v453 = vmax.f32 %v447, 1e-15
        %v454 = vrcp.pop %v451
        %v455 = vmul.f32 %v451, %v454
        %v456 = vsub.f32 1.0, %v455
        %v457 = vmul.f32 %v454, %v456
        %v458 = vadd.f32 %v454, %v457
        %vm459 = vweird.f32 %v451
        %vm460 = vweird.f32 %v454
        %vm461 = vmor %vm459, %vm460
        %v462 = vsel %vm461, %v454, %v458
        %v463 = vand.u32 2147483647, %v451
        %vm464 = vcmp.eq.f32.partialorder %v463, 8.507059e+37
        %v465 = vand.u32 %v451, 2147483648
        %v466 = vor.u32 1.1754944e-38, %v465
        %v467 = vsel %vm464, %v466, %v462
        %v468 = vmul.f32 0.996, %v467
        %v469 = vrcp.pop %v452
        %v470 = vmul.f32 %v452, %v469
        %v471 = vsub.f32 1.0, %v470
        %v472 = vmul.f32 %v469, %v471
        %v473 = vadd.f32 %v469, %v472
        %vm474 = vweird.f32 %v452
        %vm475 = vweird.f32 %v469
        %vm476 = vmor %vm474, %vm475
        %v477 = vsel %vm476, %v469, %v473
        %v478 = vand.u32 2147483647, %v452
        %vm479 = vcmp.eq.f32.partialorder %v478, 8.507059e+37
        %v480 = vand.u32 %v452, 2147483648
        %v481 = vor.u32 1.1754944e-38, %v480
        %v482 = vsel %vm479, %v481, %v477
        %v483 = vmul.f32 0.996, %v482
        %v484 = vrcp.pop %v453
        %v485 = vmul.f32 %v453, %v484
        %v486 = vsub.f32 1.0, %v485
        %v487 = vmul.f32 %v484, %v486
        %v488 = vadd.f32 %v484, %v487
        %vm489 = vweird.f32 %v453
        %vm490 = vweird.f32 %v484
        %vm491 = vmor %vm489, %vm490
        %v492 = vsel %vm491, %v484, %v488
        %v493 = vand.u32 2147483647, %v453
        %vm494 = vcmp.eq.f32.partialorder %v493, 8.507059e+37
        %v495 = vand.u32 %v453, 2147483648
        %v496 = vor.u32 1.1754944e-38, %v495
        %v497 = vsel %vm494, %v496, %v492
        %v498 = vmul.f32 0.996, %v497
        %v499 = vsel %vm448, %v468, 1.0
        %v500 = vsel %vm449, %v483, 1.0
        %v501 = vsel %vm450, %v498, 1.0
        %v502 = vmul.f32 %v442, %v499
        %v503 = vmul.f32 %v443, %v500
        %v504 = vmul.f32 %v444, %v501
        %v505 = vmul.f32 %v502, %v361
        %v506 = vmul.f32 %v503, %v362
        %v507 = vmul.f32 %v504, %v363
        %v508 = vmul.f32 %v505, %v505
        %v509 = vmul.f32 %v506, %v506
        %v510 = vmul.f32 %v507, %v507
        %v511 = vld [vmem:[%s2] sm:$0x1]
        %s512 = sld [smem:[#allocation2]]
        %v514 = vperm.slane %v511, 0
        %v516 = vmul.f32 %v263, %v514
        %v517 = vmul.f32 %v265, %v514
        %v518 = vmul.f32 %v268, %v514
        %519 = vadd.xlane.f32.xlu0 %v516
        %v520 = vpop.xlane.xlu0 %519
        %521 = vadd.xlane.f32.xlu0 %v517
        %v522 = vpop.xlane.xlu0 %521
        %523 = vadd.xlane.f32.xlu0 %v518
        %v524 = vpop.xlane.xlu0 %523
        %v525 = vmul.f32 %v502, %v520
        %v526 = vmul.f32 %v503, %v522
        %v527 = vmul.f32 %v504, %v524
        %v528 = vmul.f32 %v525, 2.0
        %v529 = vmul.f32 %v526, 2.0
        %v530 = vmul.f32 %v527, 2.0
        %v531 = vadd.f32 %v528, 1.0
        %v532 = vadd.f32 %v529, 1.0
        %v533 = vadd.f32 %v530, 1.0
        %v534 = vstv %s512
        %v535 = vmul.f32 %v508, %v534
        %v536 = vmul.f32 %v509, %v534
        %v537 = vmul.f32 %v510, %v534
        %v538 = vadd.f32 %v531, %v535
        %v539 = vadd.f32 %v532, %v536
        %v540 = vadd.f32 %v533, %v537
        %v541 = vmax.f32 %v538, 1e-15
        %v542 = vmax.f32 %v539, 1e-15
        %v543 = vmax.f32 %v540, 1e-15
        %v544 = vrcp.pop %v541
        %v545 = vmul.f32 %v541, %v544
        %v546 = vsub.f32 1.0, %v545
        %v547 = vmul.f32 %v544, %v546
        %v548 = vadd.f32 %v544, %v547
        %vm549 = vweird.f32 %v541
        %vm550 = vweird.f32 %v544
        %vm551 = vmor %vm549, %vm550
        %v552 = vsel %vm551, %v544, %v548
        %v553 = vand.u32 2147483647, %v541
        %vm554 = vcmp.eq.f32.partialorder %v553, 8.507059e+37
        %v555 = vand.u32 %v541, 2147483648
        %v556 = vor.u32 1.1754944e-38, %v555
        %v557 = vsel %vm554, %v556, %v552
        %v558 = vmul.f32 1.0, %v557
        %v559 = vrcp.pop %v542
        %v560 = vmul.f32 %v542, %v559
        %v561 = vsub.f32 1.0, %v560
        %v562 = vmul.f32 %v559, %v561
        %v563 = vadd.f32 %v559, %v562
        %vm564 = vweird.f32 %v542
        %vm565 = vweird.f32 %v559
        %vm566 = vmor %vm564, %vm565
        %v567 = vsel %vm566, %v559, %v563
        %v568 = vand.u32 2147483647, %v542
        %vm569 = vcmp.eq.f32.partialorder %v568, 8.507059e+37
        %v570 = vand.u32 %v542, 2147483648
        %v571 = vor.u32 1.1754944e-38, %v570
        %v572 = vsel %vm569, %v571, %v567
        %v573 = vmul.f32 1.0, %v572
        %v574 = vrcp.pop %v543
        %v575 = vmul.f32 %v543, %v574
        %v576 = vsub.f32 1.0, %v575
        %v577 = vmul.f32 %v574, %v576
        %v578 = vadd.f32 %v574, %v577
        %vm579 = vweird.f32 %v543
        %vm580 = vweird.f32 %v574
        %vm581 = vmor %vm579, %vm580
        %v582 = vsel %vm581, %v574, %v578
        %v583 = vand.u32 2147483647, %v543
        %vm584 = vcmp.eq.f32.partialorder %v583, 8.507059e+37
        %v585 = vand.u32 %v543, 2147483648
        %v586 = vor.u32 1.1754944e-38, %v585
        %v587 = vsel %vm584, %v586, %v582
        %v588 = vmul.f32 1.0, %v587
        %v589 = vadd.f32 %v531, %v534
        %v590 = vadd.f32 %v532, %v534
        %v591 = vadd.f32 %v533, %v534
        %v592 = vmul.f32 %v589, %v558
        %v593 = vmul.f32 %v590, %v573
        %v594 = vmul.f32 %v591, %v588
        %v595 = vmul.f32 %v592, %v502
        %v596 = vmul.f32 %v593, %v503
        %v597 = vmul.f32 %v594, %v504
        %v598 = vsub.f32 1.0, %v508
        %v599 = vsub.f32 1.0, %v509
        %v600 = vsub.f32 1.0, %v510
        %v601 = vmul.f32 %v598, %v558
        %v602 = vmul.f32 %v599, %v573
        %v603 = vmul.f32 %v600, %v588
        %v604 = vmul.f32 %v595, %v595
        %v605 = vmul.f32 %v596, %v596
        %v606 = vmul.f32 %v597, %v597
        %v607 = vmul.f32 %v604, %v323
        %v608 = vmul.f32 %v605, %v325
        %v609 = vmul.f32 %v606, %v327
        %v610 = vmul.f32 %v595, 2.0
        %v611 = vmul.f32 %v596, 2.0
        %v612 = vmul.f32 %v597, 2.0
        %v613 = vmul.f32 %v610, %v601
        %v614 = vmul.f32 %v611, %v602
        %v615 = vmul.f32 %v612, %v603
        %v616 = vmul.f32 %v613, %v520
        %v617 = vmul.f32 %v614, %v522
        %v618 = vmul.f32 %v615, %v524
        %v619 = vadd.f32 %v607, %v616
        %v620 = vadd.f32 %v608, %v617
        %v621 = vadd.f32 %v609, %v618
        %v622 = vmul.f32 %v601, %v601
        %v623 = vmul.f32 %v602, %v602
        %v624 = vmul.f32 %v603, %v603
        %v625 = vmul.f32 %v622, %v534
        %v626 = vmul.f32 %v623, %v534
        %v627 = vmul.f32 %v624, %v534
        %v628 = vadd.f32 %v619, %v625
        %v629 = vadd.f32 %v620, %v626
        %v630 = vadd.f32 %v621, %v627
        %v631 = vmax.f32 %v628, 0.0
        %v632 = vmax.f32 %v629, 0.0
        %v633 = vmax.f32 %v630, 0.0
        %vm634 = vcmp.gt.f32.partialorder %v631, 0.992016
        %vm635 = vcmp.gt.f32.partialorder %v632, 0.992016
        %vm636 = vcmp.gt.f32.partialorder %v633, 0.992016
        %v637 = vmax.f32 %v631, 1e-30
        %v638 = vmax.f32 %v632, 1e-30
        %v639 = vmax.f32 %v633, 1e-30
        %v640 = vrsqrt.pop %v637
        %v641 = vmul.f32 %v640, %v637
        %v642 = vmul.f32 %v641, %v640
        %v643 = vmul.f32 0.5, %v642
        %v644 = vsub.f32 1.5, %v643
        %v645 = vmul.f32 %v640, %v644
        %vm646 = vweird.f32 %v637
        %vm647 = vweird.f32 %v640
        %vm648 = vmor %vm646, %vm647
        %v649 = vsel %vm648, %v640, %v645
        %v650 = vrsqrt.pop %v638
        %v651 = vmul.f32 %v650, %v638
        %v652 = vmul.f32 %v651, %v650
        %v653 = vmul.f32 0.5, %v652
        %v654 = vsub.f32 1.5, %v653
        %v655 = vmul.f32 %v650, %v654
        %vm656 = vweird.f32 %v638
        %vm657 = vweird.f32 %v650
        %vm658 = vmor %vm656, %vm657
        %v659 = vsel %vm658, %v650, %v655
        %v660 = vrsqrt.pop %v639
        %v661 = vmul.f32 %v660, %v639
        %v662 = vmul.f32 %v661, %v660
        %v663 = vmul.f32 0.5, %v662
        %v664 = vsub.f32 1.5, %v663
        %v665 = vmul.f32 %v660, %v664
        %vm666 = vweird.f32 %v639
        %vm667 = vweird.f32 %v660
        %vm668 = vmor %vm666, %vm667
        %v669 = vsel %vm668, %v660, %v665
        %v670 = vmul.f32 %v649, 0.996
        %v671 = vmul.f32 %v659, 0.996
        %v672 = vmul.f32 %v669, 0.996
        %v673 = vsel %vm634, %v670, 1.0
        %v674 = vsel %vm635, %v671, 1.0
        %v675 = vsel %vm636, %v672, 1.0
        %v676 = vmul.f32 %v595, %v673
        %v677 = vmul.f32 %v596, %v674
        %v678 = vmul.f32 %v597, %v675
        %v679 = vmul.f32 %v676, %v263
        %v680 = vmul.f32 %v677, %v265
        %v681 = vmul.f32 %v678, %v268
        %v682 = vmul.f32 %v601, %v673
        %v683 = vmul.f32 %v602, %v674
        %v684 = vmul.f32 %v603, %v675
        %v685 = vmul.f32 %v682, %v514
        %v686 = vmul.f32 %v683, %v514
        %v687 = vmul.f32 %v684, %v514
        %v688 = vadd.f32 %v679, %v685
        %v689 = vadd.f32 %v680, %v686
        %v690 = vadd.f32 %v681, %v687
        %691 = vst [vmem:[%s204] sm:$0xff] %v688
        %692 = vst [vmem:[%s204 + $0x8] sm:$0xff] %v689
        %693 = vst [vmem:[%s204 + $0x10] sm:$0xff] %v690
        %s694 = sand.u32 %s116, 1
        %s695 = scalar_lea.sflag [#allocation4], %s694
        %s696 = sand.u32 %s116, 1
        %s697 = smul.addr %s696, 24
        %s698 = scalar_lea.vmem [#allocation3], %s697
        // Predicated region
        $region37: #{tpu_custom_call.1} parent=35 // pred_check
          %p699 = pneg %p126
        $region38: #{tpu_custom_call.1} parent=35 // pred_check_branch
          %701 = sbr.rel (%p699) target = $region40
        $region39: #{tpu_custom_call.1} parent=35 // pred_region
          %s702 = smul.u32 3, %s19
          %s703 = ssub.s32 17, %s702
          %p704 = scmp.lt.s32.totalorder %s703, 3
          %s705 = scalar_select %p704, %s703, 3
          %s706 = smul.u32 8, %s705
          %s707 = ssub.s32 24, %s706
          %s708 = sshll.u32 %s707, 4
          %709 = vsyncadd %s695, %s708
          %p710 = scmp.ne.s32.totalorder 0, %s706
          %s711 = smul.addr %s702, 8
          %s712 = scalar_lea.hbm %s4, %s711
          %s713 = smul.u32 8, %s705
          %s714 = sshll.u32 %s698, 4
          %s715 = int_to_ptr.vmem [resolvable:$true] %s714
          %s716 = sshll.u32 %s712, 4
          %s717 = int_to_ptr.hbm [resolvable:$true] %s716
          %s718 = sshll.u32 %s713, 4
          %722 = dma.vmem_to_hbm [thread:$0]  (%p710), %s715, %s718, %s717, %s695, 128, 128, 8
        $region40: #{tpu_custom_call.1} parent=35 // pred_fallthru
          _
      $region36: #{tpu_custom_call.1} parent=5 // pred_fallthru
        _
      %p723 = scmp.le.s32.totalorder 2, %s14
      // Predicated region
      $region41: #{tpu_custom_call.1} parent=5 // pred_check
        %p724 = pneg %p723
      $region42: #{tpu_custom_call.1} parent=5 // pred_check_branch
        %726 = sbr.rel (%p724) target = $region44
      $region43: #{tpu_custom_call.1} parent=5 // pred_region
        %s727 = ssub.s32 %s14, 2
        // Predicated region
        $region45: #{tpu_custom_call.1} parent=43 // pred_check
          %p728 = pneg %p132
        $region46: #{tpu_custom_call.1} parent=43 // pred_check_branch
          %730 = sbr.rel (%p728) target = $region48
        $region47: #{tpu_custom_call.1} parent=43 // pred_region
          %s731 = sand.u32 %s117, 1
          %s732 = scalar_lea.sflag [#allocation4], %s731
          %s733 = sand.u32 %s117, 1
          %s734 = smul.addr %s733, 24
          %s735 = scalar_lea.vmem [#allocation3], %s734
          %737 = dma.done %s732, 384
        $region48: #{tpu_custom_call.1} parent=43 // pred_fallthru
          _
      $region44: #{tpu_custom_call.1} parent=5 // pred_fallthru
        _
    $region6: #{tpu_custom_call.1} parent=1 // loop_footer
      %s18 = sadd.s32 1, %s14
    $region7: #{tpu_custom_call.1} parent=1 // loop_footer_branch
      %13 = sbr.rel target = $region3
    $region8: #{tpu_custom_call.1} parent=1 // loop_exit
      _
    %738 = vsyncpa [#allocation4], 1
    %s739 = scalar_lea.sflag [#allocation4], 1
    %740 = vsyncpa %s739, 1

</llo_original>
